<compile_context>
chip_gen: v5e
topology: v5e:2x2
jax: 0.10.0
libtpu: 0.0.40
codegen_flags: <defaults>
</compile_context>

<pallas_src>
import functools

import jax
import jax.numpy as jnp
import numpy as np
from jax import lax
from jax.experimental import pallas as pl
from jax.experimental.pallas import tpu as pltpu

EPS = 1e-5                 # BatchNorm2d default eps
LANE = 128                 # TPU lane width; channel axes padded to multiples of this
MXU_DTYPE = jnp.bfloat16   # MXU operand dtype (accumulation stays f32)


def _rup(n, m=LANE):
    return ((n + m - 1) // m) * m


# ----------------------------- Pallas kernels ------------------------------ #
def _phase_matmul_bn_relu_kernel(p_ref, w_ref, g_ref, b_ref, o_ref, sum_ref, sq_ref):
    """One grid step = one convolution phase.

    Each step: lane-dense (M, K) @ (K, C) matmul on the MXU (bf16 operands,
    f32 accumulation), store the raw result into the grid-resident output
    block, and accumulate per-channel sum / sum-of-squares into VMEM scratch
    (batch-norm pass 1).  The last step finalizes mean/var over all phases and
    rows and applies gamma/beta + ReLU in place (pass 2).
    """
    ph = pl.program_id(0)
    nph = pl.num_programs(0)

    @pl.when(ph == 0)
    def _init():
        sum_ref[...] = jnp.zeros_like(sum_ref)
        sq_ref[...] = jnp.zeros_like(sq_ref)

    y = jnp.dot(p_ref[...].astype(MXU_DTYPE), w_ref[...],
                preferred_element_type=jnp.float32)              # (M, C) f32
    o_ref[ph] = y
    sum_ref[...] += jnp.sum(y, axis=0, keepdims=True)
    sq_ref[...] += jnp.sum(y * y, axis=0, keepdims=True)

    @pl.when(ph == nph - 1)
    def _finalize():
        inv_cnt = 1.0 / float(o_ref.shape[0] * o_ref.shape[1])   # rows = P * M
        mean = sum_ref[...] * inv_cnt                            # (1, C)
        var = sq_ref[...] * inv_cnt - mean * mean                # biased variance
        scale = lax.rsqrt(var + EPS) * g_ref[...]                # (1, C)
        shift = b_ref[...] - mean * scale                        # (1, C)
        o_ref[...] = jnp.maximum(o_ref[...] * scale[None] + shift[None], 0.0)


def _phase_matmul_relu_kernel(p_ref, w_ref, o_ref):
    # Final layer (no BN): matmul -> ReLU (the module's "tanh" slot is nn.ReLU()).
    y = jnp.dot(p_ref[...].astype(MXU_DTYPE), w_ref[...],
                preferred_element_type=jnp.float32)
    o_ref[...] = jnp.maximum(y, 0.0)


def _phase_conv_bn_relu(patches, wmats, gamma, beta):
    Pp, M, K = patches.shape
    P, Kw, C = wmats.shape
    assert Kw == K and Pp in (1, P) and gamma.shape == (1, C)
    pat_idx = (lambda p: (p, 0, 0)) if Pp == P else (lambda p: (0, 0, 0))
    return pl.pallas_call(
        _phase_matmul_bn_relu_kernel,
        grid=(P,),
        in_specs=[
            pl.BlockSpec((None, M, K), pat_idx),
            pl.BlockSpec((None, K, C), lambda p: (p, 0, 0)),
            pl.BlockSpec((1, C), lambda p: (0, 0)),
            pl.BlockSpec((1, C), lambda p: (0, 0)),
        ],
        out_specs=pl.BlockSpec((P, M, C), lambda p: (0, 0, 0)),   # grid-resident
        out_shape=jax.ShapeDtypeStruct((P, M, C), jnp.float32),
        scratch_shapes=[pltpu.VMEM((1, C), jnp.float32),
                        pltpu.VMEM((1, C), jnp.float32)],
        compiler_params=pltpu.CompilerParams(
            dimension_semantics=("arbitrary",)),                  # cross-step BN accum
    )(patches, wmats, gamma, beta)


def _phase_conv_relu(patches, wmats):
    Pp, M, K = patches.shape
    P, Kw, C = wmats.shape
    assert Kw == K and Pp == P
    return pl.pallas_call(
        _phase_matmul_relu_kernel,
        grid=(P,),
        in_specs=[pl.BlockSpec((None, M, K), lambda p: (p, 0, 0)),
                  pl.BlockSpec((None, K, C), lambda p: (p, 0, 0))],
        out_specs=pl.BlockSpec((None, M, C), lambda p: (p, 0, 0)),
        out_shape=jax.ShapeDtypeStruct((P, M, C), jnp.float32),
        compiler_params=pltpu.CompilerParams(
            dimension_semantics=("parallel",)),                   # phases independent
    )(patches, wmats)


# ------------------------------- JAX glue ---------------------------------- #
def _phase_patches_convt_s2(act):
    """Phase patches for ConvTranspose2d(k=4, s=2, p=1) on NHWC (channel-padded) act.

    Phase p = dy*2+dx handles outputs (2a+dy, 2b+dx); its patch row is the
    concatenation over (r, s) in {0,1}^2 of x[a-1+dy+r, b-1+dx+s, :].
    """
    N, H, W, C = act.shape
    xp = jnp.pad(act, ((0, 0), (1, 1), (1, 1), (0, 0)))
    phases = []
    for dy in range(2):
        for dx in range(2):
            taps = [xp[:, dy + r:dy + r + H, dx + s:dx + s + W, :]
                    for r in range(2) for s in range(2)]
            phases.append(jnp.concatenate(taps, axis=-1).reshape(N * H * W, 4 * C))
    return jnp.stack(phases, axis=0)                              # (4, N*H*W, 4*C)


def _conv3x3_patches(act):
    N, H, W, C = act.shape
    xp = jnp.pad(act, ((0, 0), (1, 1), (1, 1), (0, 0)))
    taps = [xp[:, ky:ky + H, kx:kx + W, :] for ky in range(3) for kx in range(3)]
    return jnp.concatenate(taps, axis=-1).reshape(1, N * H * W, 9 * C)


def _interleave_phases(out, N, H, W):
    # out: (4 = dy*2+dx, N*H*W, C)  ->  (N, 2H, 2W, C), oy = 2a+dy, ox = 2b+dx.
    C = out.shape[-1]
    o = out.reshape(2, 2, N, H, W, C).transpose(2, 3, 0, 4, 1, 5)
    return o.reshape(N, 2 * H, 2 * W, C)


# --------------------- Weight prepacking (hoisted to init) ------------------ #
def _pack_initial_weight(w):                       # ConvTranspose weight (nz, cngf, 4, 4)
    nz, cout = w.shape[0], w.shape[1]
    kin, kout = _rup(nz), _rup(cout)
    mats = [jnp.pad(w[:, :, ky, kx], ((0, kin - nz), (0, kout - cout)))
            for ky in range(4) for kx in range(4)]
    return jnp.stack(mats, axis=0).astype(MXU_DTYPE)              # (16, kin, kout)


def _pack_convt_s2_weight(w):                      # ConvTranspose weight (Cin, Cout, 4, 4)
    cin, cout = w.shape[0], w.shape[1]
    kin, kout = _rup(cin), _rup(cout)
    mats = []
    for dy in range(2):
        for dx in range(2):
            blocks = [jnp.pad(w[:, :, 3 - dy - 2 * r, 3 - dx - 2 * s],
                              ((0, kin - cin), (0, kout - cout)))
                      for r in range(2) for s in range(2)]
            mats.append(jnp.concatenate(blocks, axis=0))          # (4*kin, kout)
    return jnp.stack(mats, axis=0).astype(MXU_DTYPE)              # (4, 4*kin, kout)


def _pack_conv3x3_weight(w):                       # Conv2d weight (Cout, Cin, 3, 3)
    cout, cin = w.shape[0], w.shape[1]
    kin, kout = _rup(cin), _rup(cout)
    blocks = [jnp.pad(jnp.transpose(w[:, :, ky, kx]), ((0, kin - cin), (0, kout - cout)))
              for ky in range(3) for kx in range(3)]
    return jnp.concatenate(blocks, axis=0)[None].astype(MXU_DTYPE)  # (1, 9*kin, kout)


def _pad_vec(v):
    return jnp.pad(v, (0, _rup(v.shape[0]) - v.shape[0])).reshape(1, -1).astype(jnp.float32)


# --------------------------- Parameter creation ----------------------------- #
def init_dcgan_g(key, isize, nz, nc, ngf, n_extra_layers=0):
    assert isize % 16 == 0, "isize has to be a multiple of 16"
    cngf, tisize = ngf // 2, 4
    while tisize != isize:
        cngf, tisize = cngf * 2, tisize * 2

    layers = []
    key, k1, k2 = jax.random.split(key, 3)
    w = 0.02 * jax.random.normal(k1, (nz, cngf, 4, 4), jnp.float32)
    g = 1.0 + 0.02 * jax.random.normal(k2, (cngf,), jnp.float32)
    b = jnp.zeros((cngf,), jnp.float32)
    layers.append(dict(kind="initial", w=w, gamma=g, beta=b,
                       wmats=_pack_initial_weight(w),
                       gamma_pad=_pad_vec(g), beta_pad=_pad_vec(b)))
    csize = 4
    while csize < isize // 2:
        key, k1, k2 = jax.random.split(key, 3)
        w = 0.02 * jax.random.normal(k1, (cngf, cngf // 2, 4, 4), jnp.float32)
        g = 1.0 + 0.02 * jax.random.normal(k2, (cngf // 2,), jnp.float32)
        b = jnp.zeros((cngf // 2,), jnp.float32)
        layers.append(dict(kind="pyramid", w=w, gamma=g, beta=b,
                           wmats=_pack_convt_s2_weight(w),
                           gamma_pad=_pad_vec(g), beta_pad=_pad_vec(b)))
        cngf //= 2
        csize *= 2
    for _ in range(n_extra_layers):
        key, k1, k2 = jax.random.split(key, 3)
        w = 0.02 * jax.random.normal(k1, (cngf, cngf, 3, 3), jnp.float32)
        g = 1.0 + 0.02 * jax.random.normal(k2, (cngf,), jnp.float32)
        b = jnp.zeros((cngf,), jnp.float32)
        layers.append(dict(kind="extra", w=w, gamma=g, beta=b,
                           wmats=_pack_conv3x3_weight(w),
                           gamma_pad=_pad_vec(g), beta_pad=_pad_vec(b)))
    key, k1 = jax.random.split(key)
    w = 0.02 * jax.random.normal(k1, (cngf, nc, 4, 4), jnp.float32)
    layers.append(dict(kind="final", w=w, nc=nc, wmats=_pack_convt_s2_weight(w)))
    return layers


# ------------------------------ Forward pass -------------------------------- #
def dcgan_g_forward_pallas(layers, x):
    # x: (N, nz, 1, 1) NCHW noise.  Internally NHWC with lane-padded channels;
    # transpose back to NCHW exactly once at the output boundary.
    N = x.shape[0]
    act = None
    for lyr in layers:
        if lyr["kind"] == "initial":
            x2 = x.reshape(N, -1)                                 # (N, nz); spatial is 1x1
            kin = lyr["wmats"].shape[1]
            patches = jnp.pad(x2, ((0, 0), (0, kin - x2.shape[1])))[None]  # (1, N, kin)
            out = _phase_conv_bn_relu(patches, lyr["wmats"],
                                      lyr["gamma_pad"], lyr["beta_pad"])   # (16, N, C)
            C = out.shape[-1]
            act = out.reshape(4, 4, N, C).transpose(2, 0, 1, 3)   # (N, 4, 4, C)
        elif lyr["kind"] == "pyramid":
            H, W = act.shape[1], act.shape[2]
            patches = _phase_patches_convt_s2(act)
            out = _phase_conv_bn_relu(patches, lyr["wmats"],
                                      lyr["gamma_pad"], lyr["beta_pad"])
            act = _interleave_phases(out, N, H, W)
        elif lyr["kind"] == "extra":
            H, W = act.shape[1], act.shape[2]
            patches = _conv3x3_patches(act)
            out = _phase_conv_bn_relu(patches, lyr["wmats"],
                                      lyr["gamma_pad"], lyr["beta_pad"])
            act = out.reshape(N, H, W, out.shape[-1])
        elif lyr["kind"] == "final":
            H, W = act.shape[1], act.shape[2]
            patches = _phase_patches_convt_s2(act)
            out = _phase_conv_relu(patches, lyr["wmats"])
            act = _interleave_phases(out, N, H, W)[:, :, :, :lyr["nc"]]
        else:
            raise ValueError(lyr["kind"])
    return act.transpose(0, 3, 1, 2)                              # NCHW out


# ---------------------- Pure-JAX reference (for checking) ------------------- #
# The reference mirrors the kernel's MXU operand precision (bf16 operands,
# f32 accumulation); BN math is f32 in both paths.
def _convt_ref(x, w, stride, padding, mxu_dtype):
    k = w.shape[2]
    rhs = jnp.flip(w, axis=(2, 3)).transpose(1, 0, 2, 3)          # (Cout, Cin, k, k)
    pad = k - 1 - padding
    return lax.conv_general_dilated(
        x.astype(mxu_dtype), rhs.astype(mxu_dtype),
        window_strides=(1, 1), padding=((pad, pad), (pad, pad)),
        lhs_dilation=(stride, stride),
        dimension_numbers=("NCHW", "OIHW", "NCHW"),
        preferred_element_type=jnp.float32)


def _conv_ref(x, w, padding, mxu_dtype):
    return lax.conv_general_dilated(
        x.astype(mxu_dtype), w.astype(mxu_dtype),
        window_strides=(1, 1), padding=((padding, padding), (padding, padding)),
        dimension_numbers=("NCHW", "OIHW", "NCHW"),
        preferred_element_type=jnp.float32)


def _bn_ref(x, gamma, beta):
    mean = x.mean(axis=(0, 2, 3), keepdims=True)
    var = jnp.square(x - mean).mean(axis=(0, 2, 3), keepdims=True)
    return (x - mean) * lax.rsqrt(var + EPS) * gamma[None, :, None, None] \
        + beta[None, :, None, None]


def dcgan_g_forward_ref(layers, x, mxu_dtype=MXU_DTYPE):
    for lyr in layers:
        if lyr["kind"] == "initial":
            x = _convt_ref(x, lyr["w"], 1, 0, mxu_dtype)
            x = jnp.maximum(_bn_ref(x, lyr["gamma"], lyr["beta"]), 0.0)
        elif lyr["kind"] == "pyramid":
            x = _convt_ref(x, lyr["w"], 2, 1, mxu_dtype)
            x = jnp.maximum(_bn_ref(x, lyr["gamma"], lyr["beta"]), 0.0)
        elif lyr["kind"] == "extra":
            x = _conv_ref(x, lyr["w"], 1, mxu_dtype)
            x = jnp.maximum(_bn_ref(x, lyr["gamma"], lyr["beta"]), 0.0)
        elif lyr["kind"] == "final":
            x = jnp.maximum(_convt_ref(x, lyr["w"], 2, 1, mxu_dtype), 0.0)
    return x


# ----------------------------------- Main ----------------------------------- #
if __name__ == "__main__":
    configs = [
        # (isize, nz, nc, ngf, n_extra_layers, batch)
        (16, 8, 4, 8, 0, 2),     # default small DCGAN_G
        (16, 8, 4, 8, 1, 2),     # exercises the extra Conv2d(3x3) path
    ]
    for (isize, nz, nc, ngf, n_extra, batch) in configs:
        key = jax.random.PRNGKey(0)
        kx, kp = jax.random.split(key)
        x = jax.random.normal(kx, (batch, nz, 1, 1), jnp.float32)   # noise (NCHW)
        layers = init_dcgan_g(kp, isize, nz, nc, ngf, n_extra)

        fwd = jax.jit(functools.partial(dcgan_g_forward_pallas, layers))
        out = jax.block_until_ready(fwd(x))
        assert out.shape == (batch, nc, isize, isize), out.shape

        ref = jax.block_until_ready(
            jax.jit(functools.partial(dcgan_g_forward_ref, layers))(x))
        # bf16 MXU operands in both paths -> tolerance reflects operand precision,
        # still far below the O(0.1) errors a structural bug would produce.
        np.testing.assert_allclose(np.asarray(out), np.asarray(ref),
                                   rtol=2e-2, atol=2e-2)

    # TODO(synk): the ngpu>1 nn.parallel.data_parallel branch is CUDA-specific
    # dispatch, not compute; it is intentionally not modeled on TPU.
    print("KERNEL_OK")
</pallas_src>

<mosaic_0001>
module attributes {stable_mosaic.version = 11 : i64} {
  func.func @_phase_matmul_bn_relu_kernel(%arg0: i32, %arg1: memref<1x2x128xf32, #tpu.memory_space<vmem>>, %arg2: memref<1x128x128xbf16, #tpu.memory_space<vmem>>, %arg3: memref<1x128xf32, #tpu.memory_space<vmem>>, %arg4: memref<1x128xf32, #tpu.memory_space<vmem>>, %arg5: memref<16x2x128xf32, #tpu.memory_space<vmem>>, %arg6: memref<1x128xf32, #tpu.memory_space<vmem>>, %arg7: memref<1x128xf32, #tpu.memory_space<vmem>>) attributes {dimension_semantics = [#tpu.dimension_semantics<arbitrary>], iteration_bounds = array<i64: 16>, scalar_prefetch = 0 : i64, scratch_operands = 2 : i64, tpu.core_type = #tpu.core_type<tc>, window_params = [{pipeline_mode = #tpu.pipeline_mode<synchronous>, transform_indices = @transform_0, window_bounds = array<i64: 1, 2, 128>}, {transform_indices = @transform_1, window_bounds = array<i64: 1, 128, 128>}, {pipeline_mode = #tpu.pipeline_mode<synchronous>, transform_indices = @transform_2, window_bounds = array<i64: 1, 128>}, {pipeline_mode = #tpu.pipeline_mode<synchronous>, transform_indices = @transform_3, window_bounds = array<i64: 1, 128>}, {pipeline_mode = #tpu.pipeline_mode<synchronous>, transform_indices = @transform_4, window_bounds = array<i64: 16, 2, 128>}]} {
    %c0_i32 = arith.constant 0 : i32
    %0 = arith.cmpi eq, %arg0, %c0_i32 : i32
    %1 = arith.extui %0 : i1 to i32
    %c0_i32_0 = arith.constant 0 : i32
    %2 = arith.cmpi ne, %1, %c0_i32_0 : i32
    scf.if %2 {
      %cst_19 = arith.constant 0.000000e+00 : f32
      %27 = vector.broadcast %cst_19 : f32 to vector<1x128xf32>
      %c0_20 = arith.constant 0 : index
      %c0_21 = arith.constant 0 : index
      %28 = vector.load %arg6[%c0_20, %c0_21] : memref<1x128xf32, #tpu.memory_space<vmem>>, vector<1x128xf32>
      tpu.vector_store %arg6[%c0_20, %c0_21], %27 {strides = array<i32>} : memref<1x128xf32, #tpu.memory_space<vmem>>, vector<1x128xf32>,
      %cst_22 = arith.constant 0.000000e+00 : f32
      %29 = vector.broadcast %cst_22 : f32 to vector<1x128xf32>
      %c0_23 = arith.constant 0 : index
      %c0_24 = arith.constant 0 : index
      %30 = vector.load %arg7[%c0_23, %c0_24] : memref<1x128xf32, #tpu.memory_space<vmem>>, vector<1x128xf32>
      tpu.vector_store %arg7[%c0_23, %c0_24], %29 {strides = array<i32>} : memref<1x128xf32, #tpu.memory_space<vmem>>, vector<1x128xf32>,
    } else {
    }
    %c0 = arith.constant 0 : index
    %c0_1 = arith.constant 0 : index
    %c0_2 = arith.constant 0 : index
    %3 = vector.load %arg1[%c0, %c0_1, %c0_2] : memref<1x2x128xf32, #tpu.memory_space<vmem>>, vector<1x2x128xf32>
    %4 = vector.shape_cast %3 : vector<1x2x128xf32> to vector<2x128xf32>
    %5 = arith.truncf %4 : vector<2x128xf32> to vector<2x128xbf16>
    %c0_3 = arith.constant 0 : index
    %c0_4 = arith.constant 0 : index
    %c0_5 = arith.constant 0 : index
    %6 = vector.load %arg2[%c0_3, %c0_4, %c0_5] : memref<1x128x128xbf16, #tpu.memory_space<vmem>>, vector<1x128x128xbf16>
    %7 = vector.shape_cast %6 : vector<1x128x128xbf16> to vector<128x128xbf16>
    %cst = arith.constant dense<0.000000e+00> : vector<2x128xf32>
    %8 = tpu.matmul %5, %7, %cst {dimension_numbers = #tpu.dot_dimension_numbers<[1], [0], [0], [1], [0, 0, 1, 1], [], []>} : vector<2x128xbf16>, vector<128x128xbf16>, vector<2x128xf32> -> vector<2x128xf32>
    %9 = arith.index_cast %arg0 : i32 to index
    %c0_6 = arith.constant 0 : index
    %c0_7 = arith.constant 0 : index
    %10 = vector.load %arg5[%9, %c0_6, %c0_7] : memref<16x2x128xf32, #tpu.memory_space<vmem>>, vector<1x2x128xf32>
    %11 = vector.shape_cast %10 : vector<1x2x128xf32> to vector<2x128xf32>
    %12 = vector.shape_cast %8 : vector<2x128xf32> to vector<1x2x128xf32>
    tpu.vector_store %arg5[%9, %c0_6, %c0_7], %12 {strides = array<i32>} : memref<16x2x128xf32, #tpu.memory_space<vmem>>, vector<1x2x128xf32>,
    %c0_8 = arith.constant 0 : index
    %c0_9 = arith.constant 0 : index
    %13 = vector.load %arg6[%c0_8, %c0_9] : memref<1x128xf32, #tpu.memory_space<vmem>>, vector<1x128xf32>
    %cst_10 = arith.constant dense<0.000000e+00> : vector<128xf32>
    %14 = vector.multi_reduction <add>, %8, %cst_10 [0] : vector<2x128xf32> to vector<128xf32>
    %15 = vector.shape_cast %14 : vector<128xf32> to vector<1x128xf32>
    %16 = arith.addf %13, %15 : vector<1x128xf32>
    %c0_11 = arith.constant 0 : index
    %c0_12 = arith.constant 0 : index
    %17 = vector.load %arg6[%c0_11, %c0_12] : memref<1x128xf32, #tpu.memory_space<vmem>>, vector<1x128xf32>
    tpu.vector_store %arg6[%c0_11, %c0_12], %16 {strides = array<i32>} : memref<1x128xf32, #tpu.memory_space<vmem>>, vector<1x128xf32>,
    %c0_13 = arith.constant 0 : index
    %c0_14 = arith.constant 0 : index
    %18 = vector.load %arg7[%c0_13, %c0_14] : memref<1x128xf32, #tpu.memory_space<vmem>>, vector<1x128xf32>
    %19 = arith.mulf %8, %8 : vector<2x128xf32>
    %cst_15 = arith.constant dense<0.000000e+00> : vector<128xf32>
    %20 = vector.multi_reduction <add>, %19, %cst_15 [0] : vector<2x128xf32> to vector<128xf32>
    %21 = vector.shape_cast %20 : vector<128xf32> to vector<1x128xf32>
    %22 = arith.addf %18, %21 : vector<1x128xf32>
    %c0_16 = arith.constant 0 : index
    %c0_17 = arith.constant 0 : index
    %23 = vector.load %arg7[%c0_16, %c0_17] : memref<1x128xf32, #tpu.memory_space<vmem>>, vector<1x128xf32>
    tpu.vector_store %arg7[%c0_16, %c0_17], %22 {strides = array<i32>} : memref<1x128xf32, #tpu.memory_space<vmem>>, vector<1x128xf32>,
    %c15_i32 = arith.constant 15 : i32
    %24 = arith.cmpi eq, %arg0, %c15_i32 : i32
    %25 = arith.extui %24 : i1 to i32
    %c0_i32_18 = arith.constant 0 : i32
    %26 = arith.cmpi ne, %25, %c0_i32_18 : i32
    scf.if %26 {
      %c0_19 = arith.constant 0 : index
      %c0_20 = arith.constant 0 : index
      %27 = vector.load %arg6[%c0_19, %c0_20] : memref<1x128xf32, #tpu.memory_space<vmem>>, vector<1x128xf32>
      %cst_21 = arith.constant 3.125000e-02 : f32
      %28 = vector.broadcast %cst_21 : f32 to vector<1x128xf32>
      %29 = arith.mulf %27, %28 : vector<1x128xf32>
      %c0_22 = arith.constant 0 : index
      %c0_23 = arith.constant 0 : index
      %30 = vector.load %arg7[%c0_22, %c0_23] : memref<1x128xf32, #tpu.memory_space<vmem>>, vector<1x128xf32>
      %cst_24 = arith.constant 3.125000e-02 : f32
      %31 = vector.broadcast %cst_24 : f32 to vector<1x128xf32>
      %32 = arith.mulf %30, %31 : vector<1x128xf32>
      %33 = arith.mulf %29, %29 : vector<1x128xf32>
      %34 = arith.subf %32, %33 : vector<1x128xf32>
      %cst_25 = arith.constant 9.99999974E-6 : f32
      %35 = vector.broadcast %cst_25 : f32 to vector<1x128xf32>
      %36 = arith.addf %34, %35 : vector<1x128xf32>
      %37 = math.rsqrt %36 : vector<1x128xf32>
      %c0_26 = arith.constant 0 : index
      %c0_27 = arith.constant 0 : index
      %38 = vector.load %arg3[%c0_26, %c0_27] : memref<1x128xf32, #tpu.memory_space<vmem>>, vector<1x128xf32>
      %39 = arith.mulf %37, %38 : vector<1x128xf32>
      %c0_28 = arith.constant 0 : index
      %c0_29 = arith.constant 0 : index
      %40 = vector.load %arg4[%c0_28, %c0_29] : memref<1x128xf32, #tpu.memory_space<vmem>>, vector<1x128xf32>
      %41 = arith.mulf %29, %39 : vector<1x128xf32>
      %42 = arith.subf %40, %41 : vector<1x128xf32>
      %c0_30 = arith.constant 0 : index
      %c0_31 = arith.constant 0 : index
      %c0_32 = arith.constant 0 : index
      %43 = vector.load %arg5[%c0_30, %c0_31, %c0_32] : memref<16x2x128xf32, #tpu.memory_space<vmem>>, vector<16x2x128xf32>
      %44 = vector.shape_cast %39 : vector<1x128xf32> to vector<1x1x128xf32>
      %45 = vector.broadcast %44 : vector<1x1x128xf32> to vector<16x2x128xf32>
      %46 = arith.mulf %43, %45 : vector<16x2x128xf32>
      %47 = vector.shape_cast %42 : vector<1x128xf32> to vector<1x1x128xf32>
      %48 = vector.broadcast %47 : vector<1x1x128xf32> to vector<16x2x128xf32>
      %49 = arith.addf %46, %48 : vector<16x2x128xf32>
      %cst_33 = arith.constant 0.000000e+00 : f32
      %50 = vector.broadcast %cst_33 : f32 to vector<16x2x128xf32>
      %51 = arith.maximumf %49, %50 : vector<16x2x128xf32>
      %c0_34 = arith.constant 0 : index
      %c0_35 = arith.constant 0 : index
      %c0_36 = arith.constant 0 : index
      %52 = vector.load %arg5[%c0_34, %c0_35, %c0_36] : memref<16x2x128xf32, #tpu.memory_space<vmem>>, vector<16x2x128xf32>
      tpu.vector_store %arg5[%c0_34, %c0_35, %c0_36], %51 {strides = array<i32>} : memref<16x2x128xf32, #tpu.memory_space<vmem>>, vector<16x2x128xf32>,
    } else {
    }
    return
  }
  func.func @transform_0(%arg0: i32) -> (i32, i32, i32) {
    %c0_i32 = arith.constant 0 : i32
    %c0_i32_0 = arith.constant 0 : i32
    %c0_i32_1 = arith.constant 0 : i32
    %c0_i32_2 = arith.constant 0 : i32
    return %c0_i32, %c0_i32_0, %c0_i32_1 : i32, i32, i32
  }
  func.func @transform_1(%arg0: i32) -> (i32, i32, i32) {
    %c0_i32 = arith.constant 0 : i32
    %c0_i32_0 = arith.constant 0 : i32
    %c0_i32_1 = arith.constant 0 : i32
    return %arg0, %c0_i32, %c0_i32_0 : i32, i32, i32
  }
  func.func @transform_2(%arg0: i32) -> (i32, i32) {
    %c0_i32 = arith.constant 0 : i32
    %c0_i32_0 = arith.constant 0 : i32
    %c0_i32_1 = arith.constant 0 : i32
    return %c0_i32, %c0_i32_0 : i32, i32
  }
  func.func @transform_3(%arg0: i32) -> (i32, i32) {
    %c0_i32 = arith.constant 0 : i32
    %c0_i32_0 = arith.constant 0 : i32
    %c0_i32_1 = arith.constant 0 : i32
    return %c0_i32, %c0_i32_0 : i32, i32
  }
  func.func @transform_4(%arg0: i32) -> (i32, i32, i32) {
    %c0_i32 = arith.constant 0 : i32
    %c0_i32_0 = arith.constant 0 : i32
    %c0_i32_1 = arith.constant 0 : i32
    %c0_i32_2 = arith.constant 0 : i32
    return %c0_i32, %c0_i32_0, %c0_i32_1 : i32, i32, i32
  }
}

module attributes {stable_mosaic.version = 11 : i64} {
  func.func @_phase_matmul_bn_relu_kernel(%arg0: i32, %arg1: memref<1x32x512xf32, #tpu.memory_space<vmem>>, %arg2: memref<1x512x128xbf16, #tpu.memory_space<vmem>>, %arg3: memref<1x128xf32, #tpu.memory_space<vmem>>, %arg4: memref<1x128xf32, #tpu.memory_space<vmem>>, %arg5: memref<4x32x128xf32, #tpu.memory_space<vmem>>, %arg6: memref<1x128xf32, #tpu.memory_space<vmem>>, %arg7: memref<1x128xf32, #tpu.memory_space<vmem>>) attributes {dimension_semantics = [#tpu.dimension_semantics<arbitrary>], iteration_bounds = array<i64: 4>, scalar_prefetch = 0 : i64, scratch_operands = 2 : i64, tpu.core_type = #tpu.core_type<tc>, window_params = [{transform_indices = @transform_0, window_bounds = array<i64: 1, 32, 512>}, {transform_indices = @transform_1, window_bounds = array<i64: 1, 512, 128>}, {pipeline_mode = #tpu.pipeline_mode<synchronous>, transform_indices = @transform_2, window_bounds = array<i64: 1, 128>}, {pipeline_mode = #tpu.pipeline_mode<synchronous>, transform_indices = @transform_3, window_bounds = array<i64: 1, 128>}, {pipeline_mode = #tpu.pipeline_mode<synchronous>, transform_indices = @transform_4, window_bounds = array<i64: 4, 32, 128>}]} {
    %c0_i32 = arith.constant 0 : i32
    %0 = arith.cmpi eq, %arg0, %c0_i32 : i32
    %1 = arith.extui %0 : i1 to i32
    %c0_i32_0 = arith.constant 0 : i32
    %2 = arith.cmpi ne, %1, %c0_i32_0 : i32
    scf.if %2 {
      %cst_19 = arith.constant 0.000000e+00 : f32
      %27 = vector.broadcast %cst_19 : f32 to vector<1x128xf32>
      %c0_20 = arith.constant 0 : index
      %c0_21 = arith.constant 0 : index
      %28 = vector.load %arg6[%c0_20, %c0_21] : memref<1x128xf32, #tpu.memory_space<vmem>>, vector<1x128xf32>
      tpu.vector_store %arg6[%c0_20, %c0_21], %27 {strides = array<i32>} : memref<1x128xf32, #tpu.memory_space<vmem>>, vector<1x128xf32>,
      %cst_22 = arith.constant 0.000000e+00 : f32
      %29 = vector.broadcast %cst_22 : f32 to vector<1x128xf32>
      %c0_23 = arith.constant 0 : index
      %c0_24 = arith.constant 0 : index
      %30 = vector.load %arg7[%c0_23, %c0_24] : memref<1x128xf32, #tpu.memory_space<vmem>>, vector<1x128xf32>
      tpu.vector_store %arg7[%c0_23, %c0_24], %29 {strides = array<i32>} : memref<1x128xf32, #tpu.memory_space<vmem>>, vector<1x128xf32>,
    } else {
    }
    %c0 = arith.constant 0 : index
    %c0_1 = arith.constant 0 : index
    %c0_2 = arith.constant 0 : index
    %3 = vector.load %arg1[%c0, %c0_1, %c0_2] : memref<1x32x512xf32, #tpu.memory_space<vmem>>, vector<1x32x512xf32>
    %4 = vector.shape_cast %3 : vector<1x32x512xf32> to vector<32x512xf32>
    %5 = arith.truncf %4 : vector<32x512xf32> to vector<32x512xbf16>
    %c0_3 = arith.constant 0 : index
    %c0_4 = arith.constant 0 : index
    %c0_5 = arith.constant 0 : index
    %6 = vector.load %arg2[%c0_3, %c0_4, %c0_5] : memref<1x512x128xbf16, #tpu.memory_space<vmem>>, vector<1x512x128xbf16>
    %7 = vector.shape_cast %6 : vector<1x512x128xbf16> to vector<512x128xbf16>
    %cst = arith.constant dense<0.000000e+00> : vector<32x128xf32>
    %8 = tpu.matmul %5, %7, %cst {dimension_numbers = #tpu.dot_dimension_numbers<[1], [0], [0], [1], [0, 0, 1, 1], [], []>} : vector<32x512xbf16>, vector<512x128xbf16>, vector<32x128xf32> -> vector<32x128xf32>
    %9 = arith.index_cast %arg0 : i32 to index
    %c0_6 = arith.constant 0 : index
    %c0_7 = arith.constant 0 : index
    %10 = vector.load %arg5[%9, %c0_6, %c0_7] : memref<4x32x128xf32, #tpu.memory_space<vmem>>, vector<1x32x128xf32>
    %11 = vector.shape_cast %10 : vector<1x32x128xf32> to vector<32x128xf32>
    %12 = vector.shape_cast %8 : vector<32x128xf32> to vector<1x32x128xf32>
    tpu.vector_store %arg5[%9, %c0_6, %c0_7], %12 {strides = array<i32>} : memref<4x32x128xf32, #tpu.memory_space<vmem>>, vector<1x32x128xf32>,
    %c0_8 = arith.constant 0 : index
    %c0_9 = arith.constant 0 : index
    %13 = vector.load %arg6[%c0_8, %c0_9] : memref<1x128xf32, #tpu.memory_space<vmem>>, vector<1x128xf32>
    %cst_10 = arith.constant dense<0.000000e+00> : vector<128xf32>
    %14 = vector.multi_reduction <add>, %8, %cst_10 [0] : vector<32x128xf32> to vector<128xf32>
    %15 = vector.shape_cast %14 : vector<128xf32> to vector<1x128xf32>
    %16 = arith.addf %13, %15 : vector<1x128xf32>
    %c0_11 = arith.constant 0 : index
    %c0_12 = arith.constant 0 : index
    %17 = vector.load %arg6[%c0_11, %c0_12] : memref<1x128xf32, #tpu.memory_space<vmem>>, vector<1x128xf32>
    tpu.vector_store %arg6[%c0_11, %c0_12], %16 {strides = array<i32>} : memref<1x128xf32, #tpu.memory_space<vmem>>, vector<1x128xf32>,
    %c0_13 = arith.constant 0 : index
    %c0_14 = arith.constant 0 : index
    %18 = vector.load %arg7[%c0_13, %c0_14] : memref<1x128xf32, #tpu.memory_space<vmem>>, vector<1x128xf32>
    %19 = arith.mulf %8, %8 : vector<32x128xf32>
    %cst_15 = arith.constant dense<0.000000e+00> : vector<128xf32>
    %20 = vector.multi_reduction <add>, %19, %cst_15 [0] : vector<32x128xf32> to vector<128xf32>
    %21 = vector.shape_cast %20 : vector<128xf32> to vector<1x128xf32>
    %22 = arith.addf %18, %21 : vector<1x128xf32>
    %c0_16 = arith.constant 0 : index
    %c0_17 = arith.constant 0 : index
    %23 = vector.load %arg7[%c0_16, %c0_17] : memref<1x128xf32, #tpu.memory_space<vmem>>, vector<1x128xf32>
    tpu.vector_store %arg7[%c0_16, %c0_17], %22 {strides = array<i32>} : memref<1x128xf32, #tpu.memory_space<vmem>>, vector<1x128xf32>,
    %c3_i32 = arith.constant 3 : i32
    %24 = arith.cmpi eq, %arg0, %c3_i32 : i32
    %25 = arith.extui %24 : i1 to i32
    %c0_i32_18 = arith.constant 0 : i32
    %26 = arith.cmpi ne, %25, %c0_i32_18 : i32
    scf.if %26 {
      %c0_19 = arith.constant 0 : index
      %c0_20 = arith.constant 0 : index
      %27 = vector.load %arg6[%c0_19, %c0_20] : memref<1x128xf32, #tpu.memory_space<vmem>>, vector<1x128xf32>
      %cst_21 = arith.constant 7.812500e-03 : f32
      %28 = vector.broadcast %cst_21 : f32 to vector<1x128xf32>
      %29 = arith.mulf %27, %28 : vector<1x128xf32>
      %c0_22 = arith.constant 0 : index
      %c0_23 = arith.constant 0 : index
      %30 = vector.load %arg7[%c0_22, %c0_23] : memref<1x128xf32, #tpu.memory_space<vmem>>, vector<1x128xf32>
      %cst_24 = arith.constant 7.812500e-03 : f32
      %31 = vector.broadcast %cst_24 : f32 to vector<1x128xf32>
      %32 = arith.mulf %30, %31 : vector<1x128xf32>
      %33 = arith.mulf %29, %29 : vector<1x128xf32>
      %34 = arith.subf %32, %33 : vector<1x128xf32>
      %cst_25 = arith.constant 9.99999974E-6 : f32
      %35 = vector.broadcast %cst_25 : f32 to vector<1x128xf32>
      %36 = arith.addf %34, %35 : vector<1x128xf32>
      %37 = math.rsqrt %36 : vector<1x128xf32>
      %c0_26 = arith.constant 0 : index
      %c0_27 = arith.constant 0 : index
      %38 = vector.load %arg3[%c0_26, %c0_27] : memref<1x128xf32, #tpu.memory_space<vmem>>, vector<1x128xf32>
      %39 = arith.mulf %37, %38 : vector<1x128xf32>
      %c0_28 = arith.constant 0 : index
      %c0_29 = arith.constant 0 : index
      %40 = vector.load %arg4[%c0_28, %c0_29] : memref<1x128xf32, #tpu.memory_space<vmem>>, vector<1x128xf32>
      %41 = arith.mulf %29, %39 : vector<1x128xf32>
      %42 = arith.subf %40, %41 : vector<1x128xf32>
      %c0_30 = arith.constant 0 : index
      %c0_31 = arith.constant 0 : index
      %c0_32 = arith.constant 0 : index
      %43 = vector.load %arg5[%c0_30, %c0_31, %c0_32] : memref<4x32x128xf32, #tpu.memory_space<vmem>>, vector<4x32x128xf32>
      %44 = vector.shape_cast %39 : vector<1x128xf32> to vector<1x1x128xf32>
      %45 = vector.broadcast %44 : vector<1x1x128xf32> to vector<4x32x128xf32>
      %46 = arith.mulf %43, %45 : vector<4x32x128xf32>
      %47 = vector.shape_cast %42 : vector<1x128xf32> to vector<1x1x128xf32>
      %48 = vector.broadcast %47 : vector<1x1x128xf32> to vector<4x32x128xf32>
      %49 = arith.addf %46, %48 : vector<4x32x128xf32>
      %cst_33 = arith.constant 0.000000e+00 : f32
      %50 = vector.broadcast %cst_33 : f32 to vector<4x32x128xf32>
      %51 = arith.maximumf %49, %50 : vector<4x32x128xf32>
      %c0_34 = arith.constant 0 : index
      %c0_35 = arith.constant 0 : index
      %c0_36 = arith.constant 0 : index
      %52 = vector.load %arg5[%c0_34, %c0_35, %c0_36] : memref<4x32x128xf32, #tpu.memory_space<vmem>>, vector<4x32x128xf32>
      tpu.vector_store %arg5[%c0_34, %c0_35, %c0_36], %51 {strides = array<i32>} : memref<4x32x128xf32, #tpu.memory_space<vmem>>, vector<4x32x128xf32>,
    } else {
    }
    return
  }
  func.func @transform_0(%arg0: i32) -> (i32, i32, i32) {
    %c0_i32 = arith.constant 0 : i32
    %c0_i32_0 = arith.constant 0 : i32
    %c0_i32_1 = arith.constant 0 : i32
    return %arg0, %c0_i32, %c0_i32_0 : i32, i32, i32
  }
  func.func @transform_1(%arg0: i32) -> (i32, i32, i32) {
    %c0_i32 = arith.constant 0 : i32
    %c0_i32_0 = arith.constant 0 : i32
    %c0_i32_1 = arith.constant 0 : i32
    return %arg0, %c0_i32, %c0_i32_0 : i32, i32, i32
  }
  func.func @transform_2(%arg0: i32) -> (i32, i32) {
    %c0_i32 = arith.constant 0 : i32
    %c0_i32_0 = arith.constant 0 : i32
    %c0_i32_1 = arith.constant 0 : i32
    return %c0_i32, %c0_i32_0 : i32, i32
  }
  func.func @transform_3(%arg0: i32) -> (i32, i32) {
    %c0_i32 = arith.constant 0 : i32
    %c0_i32_0 = arith.constant 0 : i32
    %c0_i32_1 = arith.constant 0 : i32
    return %c0_i32, %c0_i32_0 : i32, i32
  }
  func.func @transform_4(%arg0: i32) -> (i32, i32, i32) {
    %c0_i32 = arith.constant 0 : i32
    %c0_i32_0 = arith.constant 0 : i32
    %c0_i32_1 = arith.constant 0 : i32
    %c0_i32_2 = arith.constant 0 : i32
    return %c0_i32, %c0_i32_0, %c0_i32_1 : i32, i32, i32
  }
}

module attributes {stable_mosaic.version = 11 : i64} {
  func.func @_phase_matmul_relu_kernel(%arg0: i32, %arg1: memref<1x128x512xf32, #tpu.memory_space<vmem>>, %arg2: memref<1x512x128xbf16, #tpu.memory_space<vmem>>, %arg3: memref<1x128x128xf32, #tpu.memory_space<vmem>>) attributes {dimension_semantics = [#tpu.dimension_semantics<parallel>], iteration_bounds = array<i64: 4>, scalar_prefetch = 0 : i64, scratch_operands = 0 : i64, tpu.core_type = #tpu.core_type<tc>, window_params = [{transform_indices = @transform_0, window_bounds = array<i64: 1, 128, 512>}, {transform_indices = @transform_1, window_bounds = array<i64: 1, 512, 128>}, {transform_indices = @transform_2, window_bounds = array<i64: 1, 128, 128>}]} {
    %c0 = arith.constant 0 : index
    %c0_0 = arith.constant 0 : index
    %c0_1 = arith.constant 0 : index
    %0 = vector.load %arg1[%c0, %c0_0, %c0_1] : memref<1x128x512xf32, #tpu.memory_space<vmem>>, vector<1x128x512xf32>
    %1 = vector.shape_cast %0 : vector<1x128x512xf32> to vector<128x512xf32>
    %2 = arith.truncf %1 : vector<128x512xf32> to vector<128x512xbf16>
    %c0_2 = arith.constant 0 : index
    %c0_3 = arith.constant 0 : index
    %c0_4 = arith.constant 0 : index
    %3 = vector.load %arg2[%c0_2, %c0_3, %c0_4] : memref<1x512x128xbf16, #tpu.memory_space<vmem>>, vector<1x512x128xbf16>
    %4 = vector.shape_cast %3 : vector<1x512x128xbf16> to vector<512x128xbf16>
    %cst = arith.constant dense<0.000000e+00> : vector<128x128xf32>
    %5 = tpu.matmul %2, %4, %cst {dimension_numbers = #tpu.dot_dimension_numbers<[1], [0], [0], [1], [0, 0, 1, 1], [], []>} : vector<128x512xbf16>, vector<512x128xbf16>, vector<128x128xf32> -> vector<128x128xf32>
    %cst_5 = arith.constant 0.000000e+00 : f32
    %6 = vector.broadcast %cst_5 : f32 to vector<128x128xf32>
    %7 = arith.maximumf %5, %6 : vector<128x128xf32>
    %c0_6 = arith.constant 0 : index
    %c0_7 = arith.constant 0 : index
    %c0_8 = arith.constant 0 : index
    %8 = vector.load %arg3[%c0_6, %c0_7, %c0_8] : memref<1x128x128xf32, #tpu.memory_space<vmem>>, vector<1x128x128xf32>
    %9 = vector.shape_cast %8 : vector<1x128x128xf32> to vector<128x128xf32>
    %10 = vector.shape_cast %7 : vector<128x128xf32> to vector<1x128x128xf32>
    tpu.vector_store %arg3[%c0_6, %c0_7, %c0_8], %10 {strides = array<i32>} : memref<1x128x128xf32, #tpu.memory_space<vmem>>, vector<1x128x128xf32>,
    return
  }
  func.func @transform_0(%arg0: i32) -> (i32, i32, i32) {
    %c0_i32 = arith.constant 0 : i32
    %c0_i32_0 = arith.constant 0 : i32
    %c0_i32_1 = arith.constant 0 : i32
    return %arg0, %c0_i32, %c0_i32_0 : i32, i32, i32
  }
  func.func @transform_1(%arg0: i32) -> (i32, i32, i32) {
    %c0_i32 = arith.constant 0 : i32
    %c0_i32_0 = arith.constant 0 : i32
    %c0_i32_1 = arith.constant 0 : i32
    return %arg0, %c0_i32, %c0_i32_0 : i32, i32, i32
  }
  func.func @transform_2(%arg0: i32) -> (i32, i32, i32) {
    %c0_i32 = arith.constant 0 : i32
    %c0_i32_0 = arith.constant 0 : i32
    %c0_i32_1 = arith.constant 0 : i32
    return %arg0, %c0_i32, %c0_i32_0 : i32, i32, i32
  }
}

</mosaic_0001>

<llo_original>
// kernel: dcgan_g_forward_pallas.3
$region0: #{dcgan_g_forward_pallas.3}
  #allocation0 [shape = 'u32[]', space=smem, size = 0x4, offset = 0x4, fixed_abs, tag = 'smem constant byte address 0x4 - core index']
  #allocation1 [shape = 'u32[72,128]{1,0:T(1,128)}', space=vmem, size = 0x9000, scoped, tag = 'internal scratch']
  #allocation2 [shape = 'f32[1,128]{1,0:T(1,128)}', space=vmem, size = 0x200, scoped, tag = 'scratch operand']
  #allocation3 [shape = 'f32[1,128]{1,0:T(1,128)}', space=vmem, size = 0x200, scoped, tag = 'scratch operand']
  %s0 = inlined_call_operand.vmem [shape: f32[1,2,128], index: 0, kind: input, shape index: {}]
  %s1 = inlined_call_operand.hbm [shape: bf16[16,128,128], index: 1, kind: input, shape index: {}]
  %s2 = inlined_call_operand.vmem [shape: f32[1,128], index: 2, kind: input, shape index: {}]
  %s3 = inlined_call_operand.vmem [shape: f32[1,128], index: 3, kind: input, shape index: {}]
  %s4 = inlined_call_operand.vmem [shape: f32[16,2,128], index: 4, kind: output, shape index: {}]
  %s5 = sld [smem:[#allocation0]]
  $region61: #{dcgan_g_forward_pallas.3} parent=0
    _
  %s7 = ssub.s32 1, %s5
  %s8 = scalar_select 0, %s7, %s5
  $region1: #{dcgan_g_forward_pallas.3} parent=0
    #allocation4 [shape = 'u8[65536]{0}', space=vmem, size = 0x10000, scoped, tag = 'input window, operand 1']
    #allocation5 [shape = 's32[2]{0}', space=sflag, size = 0x8, scoped, tag = 'scoped memory for dcgan_g_forward_pallas.3']
    %9 = vsyncpa [#allocation5], 0
    %s10 = scalar_lea.sflag [#allocation5], 1
    %11 = vsyncpa %s10, 0
    loop: start=0, step=1, limit=18
    $region2: #{dcgan_g_forward_pallas.3} parent=1 // loop_pre_header
      _
    $region3: #{dcgan_g_forward_pallas.3} parent=1 // loop_header
      %s13 = sphi 0, %s17
      %p14 = scmp.ge.s32.totalorder %s13, 18
      %s21 = sphi 0, %s21
      %s23 = sphi 0, %s21
      %s24 = sphi 0, %s23
      %s38 = sphi 0, %s24
      %s44 = sphi 0, %s46
      %s47 = sphi 0, %s44
      %s48 = sphi 0, %s47
      %s64 = sphi 0, %s48
      %s68 = sphi 0, %s68
      %s70 = sphi 0, %s68
      %s71 = sphi 0, %s70
      %s85 = sphi 0, %s71
      %s89 = sphi 0, %s89
      %s91 = sphi 0, %s89
      %s92 = sphi 0, %s91
      %s106 = sphi 0, %s92
      %s110 = sphi 0, %s110
      %s112 = sphi 0, %s110
      %s113 = sphi 0, %s112
      %s127 = sphi 0, %s113
    $region4: #{dcgan_g_forward_pallas.3} parent=1 // loop_header_branch
      %16 = sbr.rel (%p14) target = $region8
    $region5: #{dcgan_g_forward_pallas.3} parent=1 // loop_body
      %s18 = ssub.s32 %s13, 1
      %s19 = ssub.s32 %s13, 2
      %s20 = sadd.s32 %s13, 1
      %s22 = sadd.s32 %s21, 1
      %p25 = scmp.eq.s32.totalorder %s13, 15
      %p26 = scmp.ne.s32.totalorder %s21, %s23
      %p27 = scmp.eq.s32.totalorder %s13, 0
      %p28 = por %p26, %p27
      %p29 = scmp.ne.s32.totalorder %s21, %s23
      %p30 = scmp.eq.s32.totalorder %s18, 15
      %p31 = por %p29, %p30
      %p32 = scmp.ne.s32.totalorder %s23, %s24
      %p33 = scmp.eq.s32.totalorder %s18, 0
      %p34 = por %p32, %p33
      %p35 = scmp.ne.s32.totalorder %s23, %s24
      %p36 = scmp.eq.s32.totalorder %s19, 15
      %p37 = por %p35, %p36
      %p39 = scmp.ne.s32.totalorder %s24, %s38
      %p40 = scmp.eq.s32.totalorder %s19, 0
      %p41 = por %p39, %p40
      %s42 = ssub.s32 %s13, %s20
      %p43 = scmp.eq.s32.totalorder %s42, 0
      %s45 = sadd.s32 %s44, 1
      %s46 = scalar_select %p43, %s44, %s45
      %p49 = pneg %p43
      %p50 = scmp.eq.s32.totalorder %s13, 15
      %p51 = por %p49, %p50
      %p52 = scmp.ne.s32.totalorder %s44, %s47
      %p53 = scmp.eq.s32.totalorder %s13, 0
      %p54 = por %p52, %p53
      %p55 = scmp.ne.s32.totalorder %s44, %s47
      %p56 = scmp.eq.s32.totalorder %s18, 15
      %p57 = por %p55, %p56
      %p58 = scmp.ne.s32.totalorder %s47, %s48
      %p59 = scmp.eq.s32.totalorder %s18, 0
      %p60 = por %p58, %p59
      %p61 = scmp.ne.s32.totalorder %s47, %s48
      %p62 = scmp.eq.s32.totalorder %s19, 15
      %p63 = por %p61, %p62
      %p65 = scmp.ne.s32.totalorder %s48, %s64
      %p66 = scmp.eq.s32.totalorder %s19, 0
      %p67 = por %p65, %p66
      %s69 = sadd.s32 %s68, 1
      %p72 = scmp.eq.s32.totalorder %s13, 15
      %p73 = scmp.ne.s32.totalorder %s68, %s70
      %p74 = scmp.eq.s32.totalorder %s13, 0
      %p75 = por %p73, %p74
      %p76 = scmp.ne.s32.totalorder %s68, %s70
      %p77 = scmp.eq.s32.totalorder %s18, 15
      %p78 = por %p76, %p77
      %p79 = scmp.ne.s32.totalorder %s70, %s71
      %p80 = scmp.eq.s32.totalorder %s18, 0
      %p81 = por %p79, %p80
      %p82 = scmp.ne.s32.totalorder %s70, %s71
      %p83 = scmp.eq.s32.totalorder %s19, 15
      %p84 = por %p82, %p83
      %p86 = scmp.ne.s32.totalorder %s71, %s85
      %p87 = scmp.eq.s32.totalorder %s19, 0
      %p88 = por %p86, %p87
      %s90 = sadd.s32 %s89, 1
      %p93 = scmp.eq.s32.totalorder %s13, 15
      %p94 = scmp.ne.s32.totalorder %s89, %s91
      %p95 = scmp.eq.s32.totalorder %s13, 0
      %p96 = por %p94, %p95
      %p97 = scmp.ne.s32.totalorder %s89, %s91
      %p98 = scmp.eq.s32.totalorder %s18, 15
      %p99 = por %p97, %p98
      %p100 = scmp.ne.s32.totalorder %s91, %s92
      %p101 = scmp.eq.s32.totalorder %s18, 0
      %p102 = por %p100, %p101
      %p103 = scmp.ne.s32.totalorder %s91, %s92
      %p104 = scmp.eq.s32.totalorder %s19, 15
      %p105 = por %p103, %p104
      %p107 = scmp.ne.s32.totalorder %s92, %s106
      %p108 = scmp.eq.s32.totalorder %s19, 0
      %p109 = por %p107, %p108
      %s111 = sadd.s32 %s110, 1
      %p114 = scmp.eq.s32.totalorder %s13, 15
      %p115 = scmp.ne.s32.totalorder %s110, %s112
      %p116 = scmp.eq.s32.totalorder %s13, 0
      %p117 = por %p115, %p116
      %p118 = scmp.ne.s32.totalorder %s110, %s112
      %p119 = scmp.eq.s32.totalorder %s18, 15
      %p120 = por %p118, %p119
      %p121 = scmp.ne.s32.totalorder %s112, %s113
      %p122 = scmp.eq.s32.totalorder %s18, 0
      %p123 = por %p121, %p122
      %p124 = scmp.ne.s32.totalorder %s112, %s113
      %p125 = scmp.eq.s32.totalorder %s19, 15
      %p126 = por %p124, %p125
      %p128 = scmp.ne.s32.totalorder %s113, %s127
      %p129 = scmp.eq.s32.totalorder %s19, 0
      %p130 = por %p128, %p129
      %p131 = scmp.le.s32.totalorder 1, %s13
      %p132 = scmp.lt.s32.totalorder %s13, 17
      %p133 = pnand %p131, %p132
      %p134 = pneg %p133
      // Predicated region
      $region9: #{dcgan_g_forward_pallas.3} parent=5 // pred_check
        _
      $region10: #{dcgan_g_forward_pallas.3} parent=5 // pred_check_branch
        %136 = sbr.rel (%p133) target = $region12
      $region11: #{dcgan_g_forward_pallas.3} parent=5 // pred_region
        %s137 = ssub.s32 %s13, 1
        // Predicated region
        $region13: #{dcgan_g_forward_pallas.3} parent=11 // pred_check
          %p138 = pneg %p34
        $region14: #{dcgan_g_forward_pallas.3} parent=11 // pred_check_branch
          %140 = sbr.rel (%p138) target = $region16
        $region15: #{dcgan_g_forward_pallas.3} parent=11 // pred_region
          _
        $region16: #{dcgan_g_forward_pallas.3} parent=11 // pred_fallthru
          _
        // Predicated region
        $region17: #{dcgan_g_forward_pallas.3} parent=11 // pred_check
          %p141 = pneg %p81
        $region18: #{dcgan_g_forward_pallas.3} parent=11 // pred_check_branch
          %143 = sbr.rel (%p141) target = $region20
        $region19: #{dcgan_g_forward_pallas.3} parent=11 // pred_region
          _
        $region20: #{dcgan_g_forward_pallas.3} parent=11 // pred_fallthru
          _
        // Predicated region
        $region21: #{dcgan_g_forward_pallas.3} parent=11 // pred_check
          %p144 = pneg %p102
        $region22: #{dcgan_g_forward_pallas.3} parent=11 // pred_check_branch
          %146 = sbr.rel (%p144) target = $region24
        $region23: #{dcgan_g_forward_pallas.3} parent=11 // pred_region
          _
        $region24: #{dcgan_g_forward_pallas.3} parent=11 // pred_fallthru
          _
      $region12: #{dcgan_g_forward_pallas.3} parent=5 // pred_fallthru
        _
      %p147 = scmp.lt.s32.totalorder %s13, 16
      // Predicated region
      $region25: #{dcgan_g_forward_pallas.3} parent=5 // pred_check
        %p148 = pneg %p147
      $region26: #{dcgan_g_forward_pallas.3} parent=5 // pred_check_branch
        %150 = sbr.rel (%p148) target = $region28
      $region27: #{dcgan_g_forward_pallas.3} parent=5 // pred_region
        // Predicated region
        $region29: #{dcgan_g_forward_pallas.3} parent=27 // pred_check
          %p151 = pneg %p54
        $region30: #{dcgan_g_forward_pallas.3} parent=27 // pred_check_branch
          %153 = sbr.rel (%p151) target = $region32
        $region31: #{dcgan_g_forward_pallas.3} parent=27 // pred_region
          %s154 = sand.u32 %s44, 1
          %s155 = scalar_lea.sflag [#allocation5], %s154
          %s156 = sand.u32 %s44, 1
          %s157 = smul.addr %s156, 64
          %s158 = scalar_lea.vmem [#allocation4], %s157
          %160 = vsyncadd %s155, 0
          %s161 = smul.addr %s13, 16
          %s162 = smul.addr %s161, 4
          %s163 = scalar_lea.hbm %s1, %s162
          %s164 = sshll.u32 %s163, 4
          %s165 = int_to_ptr.hbm [resolvable:$true] %s164
          %s166 = sshll.u32 %s158, 4
          %s167 = int_to_ptr.vmem [resolvable:$true] %s166
          %172 = dma.hbm_to_vmem [thread:$0]  %s165, 1024, %s167, %s155, 64, 64, 4
        $region32: #{dcgan_g_forward_pallas.3} parent=27 // pred_fallthru
          _
      $region28: #{dcgan_g_forward_pallas.3} parent=5 // pred_fallthru
        _
      %p173 = scmp.le.s32.totalorder 1, %s13
      %p174 = scmp.lt.s32.totalorder %s13, 17
      %p175 = pnand %p173, %p174
      %p176 = pneg %p175
      // Predicated region
      $region33: #{dcgan_g_forward_pallas.3} parent=5 // pred_check
        _
      $region34: #{dcgan_g_forward_pallas.3} parent=5 // pred_check_branch
        %178 = sbr.rel (%p175) target = $region36
      $region35: #{dcgan_g_forward_pallas.3} parent=5 // pred_region
        %s179 = ssub.s32 %s13, 1
        %s180 = sand.u32 %s47, 1
        %s181 = scalar_lea.sflag [#allocation5], %s180
        %s182 = sand.u32 %s47, 1
        %s183 = smul.addr %s182, 64
        %s184 = scalar_lea.vmem [#allocation4], %s183
        // Predicated region
        $region37: #{dcgan_g_forward_pallas.3} parent=35 // pred_check
          %p185 = pneg %p60
        $region38: #{dcgan_g_forward_pallas.3} parent=35 // pred_check_branch
          %187 = sbr.rel (%p185) target = $region40
        $region39: #{dcgan_g_forward_pallas.3} parent=35 // pred_region
          %189 = dma.done %s181, 1024
        $region40: #{dcgan_g_forward_pallas.3} parent=35 // pred_fallthru
          _
        %p190 = pneg %p34
        %p191 = pneg %p31
        %s192 = sand.u32 %s47, 1
        %s193 = scalar_lea.sflag [#allocation5], %s192
        %s194 = sand.u32 %s47, 1
        %s195 = smul.addr %s194, 64
        %s196 = scalar_lea.vmem [#allocation4], %s195
        %p197 = pneg %p60
        %p198 = pneg %p57
        %p199 = pneg %p81
        %p200 = pneg %p78
        %p201 = pneg %p102
        %p202 = pneg %p99
        %p203 = pneg %p123
        %p204 = pneg %p120
        %p205 = scmp.eq.s32.totalorder %s18, 0
        // Predicated region
        $region41: #{dcgan_g_forward_pallas.3} parent=35 // pred_check
          %p206 = pneg %p205
        $region42: #{dcgan_g_forward_pallas.3} parent=35 // pred_check_branch
          %208 = sbr.rel (%p206) target = $region44
        $region43: #{dcgan_g_forward_pallas.3} parent=35 // pred_region
          %209 = vst [vmem:[#allocation2] sm:$0x1] 0.0
          %210 = vst [vmem:[#allocation3] sm:$0x1] 0.0
        $region44: #{dcgan_g_forward_pallas.3} parent=35 // pred_fallthru
          _
        %v211 = vld [vmem:[%s0] sm:$0x3]
        %v212 = vpack.c.bf16 %v211, %v211
        %v213 = vld [vmem:[%s184] sm:$0xf]
        %v214 = vld [vmem:[%s184 + $0x4] sm:$0xf]
        %v215 = vld [vmem:[%s184 + $0x8] sm:$0xf]
        %v216 = vld [vmem:[%s184 + $0xc] sm:$0xf]
        %v217 = vld [vmem:[%s184 + $0x10] sm:$0xf]
        %v218 = vld [vmem:[%s184 + $0x14] sm:$0xf]
        %v219 = vld [vmem:[%s184 + $0x18] sm:$0xf]
        %v220 = vld [vmem:[%s184 + $0x1c] sm:$0xf]
        %v221 = vld [vmem:[%s184 + $0x20] sm:$0xf]
        %v222 = vld [vmem:[%s184 + $0x24] sm:$0xf]
        %v223 = vld [vmem:[%s184 + $0x28] sm:$0xf]
        %v224 = vld [vmem:[%s184 + $0x2c] sm:$0xf]
        %v225 = vld [vmem:[%s184 + $0x30] sm:$0xf]
        %v226 = vld [vmem:[%s184 + $0x34] sm:$0xf]
        %v227 = vld [vmem:[%s184 + $0x38] sm:$0xf]
        %v228 = vld [vmem:[%s184 + $0x3c] sm:$0xf]
        %v245 = vunpack.c.l.b16 %v213
        %v246 = vunpack.c.l.b16 %v214
        %v247 = vunpack.c.l.b16 %v215
        %v248 = vunpack.c.l.b16 %v216
        %v249 = vunpack.c.l.b16 %v217
        %v250 = vunpack.c.l.b16 %v218
        %v251 = vunpack.c.l.b16 %v219
        %v252 = vunpack.c.l.b16 %v220
        %v253 = vunpack.c.l.b16 %v221
        %v254 = vunpack.c.l.b16 %v222
        %v255 = vunpack.c.l.b16 %v223
        %v256 = vunpack.c.l.b16 %v224
        %v257 = vunpack.c.l.b16 %v225
        %v258 = vunpack.c.l.b16 %v226
        %v259 = vunpack.c.l.b16 %v227
        %v260 = vunpack.c.l.b16 %v228
        %v261 = vpack.c.b16 %v246, %v245
        %v262 = vpack.c.b16 %v248, %v247
        %v263 = vpack.c.b16 %v250, %v249
        %v264 = vpack.c.b16 %v252, %v251
        %v265 = vpack.c.b16 %v254, %v253
        %v266 = vpack.c.b16 %v256, %v255
        %v267 = vpack.c.b16 %v258, %v257
        %v268 = vpack.c.b16 %v260, %v259
        %277 = vmatpush.bf16.msra.mxu0 %v268
        %278 = vmatpush.bf16.msra.mxu0 %v267
        %279 = vmatpush.bf16.msra.mxu0 %v266
        %280 = vmatpush.bf16.msra.mxu0 %v265
        %281 = vmatpush.bf16.msra.mxu0 %v264
        %282 = vmatpush.bf16.msra.mxu0 %v263
        %283 = vmatpush.bf16.msra.mxu0 %v262
        %284 = vmatpush.bf16.msra.mxu0 %v261
        %285 = vmatmul.bf16.gmra.mxu0 %v212
        %v286 = vpop.f32.mrf.mxu0
        %v287 = vadd.f32 0.0, %v286
        %v288 = vpop.f32.mrf.mxu0
        %289 = vdwg.mxu0
        %s290 = smul.u32 %s18, 2
        %s291 = scalar_lea.vmem %s4, %s290
        %292 = vst [vmem:[%s291] sm:$0x3] %v287
        %v293 = vld [vmem:[#allocation2] sm:$0x1]
        %vm294 = vcmask 1041408
        %v295 = vsel %vm294, %v287, 0.0
        %v296 = vrot.slane %v295, 4
        %v297 = vadd.f32 %v295, %v296
        %v298 = vrot.slane %v297, 2
        %v299 = vadd.f32 %v297, %v298
        %v300 = vrot.slane %v299, 1
        %v301 = vadd.f32 %v299, %v300
        %v302 = vadd.f32 %v293, %v301
        %303 = vst [vmem:[#allocation2] sm:$0x1] %v302
        %v304 = vld [vmem:[#allocation3] sm:$0x1]
        %v305 = vmul.f32 %v287, %v287
        %v306 = vsel %vm294, %v305, 0.0
        %v307 = vrot.slane %v306, 4
        %v308 = vadd.f32 %v306, %v307
        %v309 = vrot.slane %v308, 2
        %v310 = vadd.f32 %v308, %v309
        %v311 = vrot.slane %v310, 1
        %v312 = vadd.f32 %v310, %v311
        %v313 = vadd.f32 %v304, %v312
        %314 = vst [vmem:[#allocation3] sm:$0x1] %v313
        %p315 = scmp.eq.s32.totalorder %s18, 15
        // Predicated region
        $region45: #{dcgan_g_forward_pallas.3} parent=35 // pred_check
          %p316 = pneg %p315
        $region46: #{dcgan_g_forward_pallas.3} parent=35 // pred_check_branch
          %318 = sbr.rel (%p316) target = $region48
        $region47: #{dcgan_g_forward_pallas.3} parent=35 // pred_region
          %v319 = vld [vmem:[#allocation2] sm:$0x1]
          %v320 = vmul.f32 %v319, 0.03125
          %v321 = vld [vmem:[#allocation3] sm:$0x1]
          %v322 = vmul.f32 %v321, 0.03125
          %v323 = vmul.f32 %v320, %v320
          %v324 = vsub.f32 %v322, %v323
          %v325 = vadd.f32 %v324, 1e-05
          %v326 = vrsqrt.pop %v325
          %v327 = vmul.f32 %v326, %v325
          %v328 = vmul.f32 %v327, %v326
          %v329 = vmul.f32 0.5, %v328
          %v330 = vsub.f32 1.5, %v329
          %v331 = vmul.f32 %v326, %v330
          %vm332 = vweird.f32 %v325
          %vm333 = vweird.f32 %v326
          %vm334 = vmor %vm332, %vm333
          %v335 = vsel %vm334, %v326, %v331
          %v336 = vld [vmem:[%s2] sm:$0x1]
          %v337 = vmul.f32 %v335, %v336
          %v338 = vld [vmem:[%s3] sm:$0x1]
          %v339 = vmul.f32 %v320, %v337
          %v340 = vsub.f32 %v338, %v339
          %v341 = vld [vmem:[%s4] sm:$0x3]
          %v342 = vld [vmem:[%s4 + $0x2] sm:$0x3]
          %v343 = vld [vmem:[%s4 + $0x4] sm:$0x3]
          %v344 = vld [vmem:[%s4 + $0x6] sm:$0x3]
          %v345 = vld [vmem:[%s4 + $0x8] sm:$0x3]
          %v346 = vld [vmem:[%s4 + $0xa] sm:$0x3]
          %v347 = vld [vmem:[%s4 + $0xc] sm:$0x3]
          %v348 = vld [vmem:[%s4 + $0xe] sm:$0x3]
          %v349 = vld [vmem:[%s4 + $0x10] sm:$0x3]
          %v350 = vld [vmem:[%s4 + $0x12] sm:$0x3]
          %v351 = vld [vmem:[%s4 + $0x14] sm:$0x3]
          %v352 = vld [vmem:[%s4 + $0x16] sm:$0x3]
          %v353 = vld [vmem:[%s4 + $0x18] sm:$0x3]
          %v354 = vld [vmem:[%s4 + $0x1a] sm:$0x3]
          %v355 = vld [vmem:[%s4 + $0x1c] sm:$0x3]
          %v356 = vld [vmem:[%s4 + $0x1e] sm:$0x3]
          %v358 = vperm.slane %v337, 0
          %v360 = vmul.f32 %v341, %v358
          %v361 = vmul.f32 %v342, %v358
          %v362 = vmul.f32 %v343, %v358
          %v363 = vmul.f32 %v344, %v358
          %v364 = vmul.f32 %v345, %v358
          %v365 = vmul.f32 %v346, %v358
          %v366 = vmul.f32 %v347, %v358
          %v367 = vmul.f32 %v348, %v358
          %v368 = vmul.f32 %v349, %v358
          %v369 = vmul.f32 %v350, %v358
          %v370 = vmul.f32 %v351, %v358
          %v371 = vmul.f32 %v352, %v358
          %v372 = vmul.f32 %v353, %v358
          %v373 = vmul.f32 %v354, %v358
          %v374 = vmul.f32 %v355, %v358
          %v375 = vmul.f32 %v356, %v358
          %v377 = vperm.slane %v340, 0
          %v379 = vadd.f32 %v360, %v377
          %v380 = vadd.f32 %v361, %v377
          %v381 = vadd.f32 %v362, %v377
          %v382 = vadd.f32 %v363, %v377
          %v383 = vadd.f32 %v364, %v377
          %v384 = vadd.f32 %v365, %v377
          %v385 = vadd.f32 %v366, %v377
          %v386 = vadd.f32 %v367, %v377
          %v387 = vadd.f32 %v368, %v377
          %v388 = vadd.f32 %v369, %v377
          %v389 = vadd.f32 %v370, %v377
          %v390 = vadd.f32 %v371, %v377
          %v391 = vadd.f32 %v372, %v377
          %v392 = vadd.f32 %v373, %v377
          %v393 = vadd.f32 %v374, %v377
          %v394 = vadd.f32 %v375, %v377
          %v395 = vmax.f32 %v379, 0.0
          %v396 = vmax.f32 %v380, 0.0
          %v397 = vmax.f32 %v381, 0.0
          %v398 = vmax.f32 %v382, 0.0
          %v399 = vmax.f32 %v383, 0.0
          %v400 = vmax.f32 %v384, 0.0
          %v401 = vmax.f32 %v385, 0.0
          %v402 = vmax.f32 %v386, 0.0
          %v403 = vmax.f32 %v387, 0.0
          %v404 = vmax.f32 %v388, 0.0
          %v405 = vmax.f32 %v389, 0.0
          %v406 = vmax.f32 %v390, 0.0
          %v407 = vmax.f32 %v391, 0.0
          %v408 = vmax.f32 %v392, 0.0
          %v409 = vmax.f32 %v393, 0.0
          %v410 = vmax.f32 %v394, 0.0
          %411 = vst [vmem:[%s4] sm:$0x3] %v395
          %412 = vst [vmem:[%s4 + $0x2] sm:$0x3] %v396
          %413 = vst [vmem:[%s4 + $0x4] sm:$0x3] %v397
          %414 = vst [vmem:[%s4 + $0x6] sm:$0x3] %v398
          %415 = vst [vmem:[%s4 + $0x8] sm:$0x3] %v399
          %416 = vst [vmem:[%s4 + $0xa] sm:$0x3] %v400
          %417 = vst [vmem:[%s4 + $0xc] sm:$0x3] %v401
          %418 = vst [vmem:[%s4 + $0xe] sm:$0x3] %v402
          %419 = vst [vmem:[%s4 + $0x10] sm:$0x3] %v403
          %420 = vst [vmem:[%s4 + $0x12] sm:$0x3] %v404
          %421 = vst [vmem:[%s4 + $0x14] sm:$0x3] %v405
          %422 = vst [vmem:[%s4 + $0x16] sm:$0x3] %v406
          %423 = vst [vmem:[%s4 + $0x18] sm:$0x3] %v407
          %424 = vst [vmem:[%s4 + $0x1a] sm:$0x3] %v408
          %425 = vst [vmem:[%s4 + $0x1c] sm:$0x3] %v409
          %426 = vst [vmem:[%s4 + $0x1e] sm:$0x3] %v410
        $region48: #{dcgan_g_forward_pallas.3} parent=35 // pred_fallthru
          _
        // Predicated region
        $region49: #{dcgan_g_forward_pallas.3} parent=35 // pred_check
          %p427 = pneg %p120
        $region50: #{dcgan_g_forward_pallas.3} parent=35 // pred_check_branch
          %429 = sbr.rel (%p427) target = $region52
        $region51: #{dcgan_g_forward_pallas.3} parent=35 // pred_region
          _
        $region52: #{dcgan_g_forward_pallas.3} parent=35 // pred_fallthru
          _
        // Predicated region
        $region53: #{dcgan_g_forward_pallas.3} parent=35 // pred_check
          %p430 = pneg %p120
        $region54: #{dcgan_g_forward_pallas.3} parent=35 // pred_check_branch
          %432 = sbr.rel (%p430) target = $region56
        $region55: #{dcgan_g_forward_pallas.3} parent=35 // pred_region
          _
        $region56: #{dcgan_g_forward_pallas.3} parent=35 // pred_fallthru
          _
      $region36: #{dcgan_g_forward_pallas.3} parent=5 // pred_fallthru
        _
      %p433 = scmp.le.s32.totalorder 2, %s13
      // Predicated region
      $region57: #{dcgan_g_forward_pallas.3} parent=5 // pred_check
        %p434 = pneg %p433
      $region58: #{dcgan_g_forward_pallas.3} parent=5 // pred_check_branch
        %436 = sbr.rel (%p434) target = $region60
      $region59: #{dcgan_g_forward_pallas.3} parent=5 // pred_region
        %s437 = ssub.s32 %s13, 2
      $region60: #{dcgan_g_forward_pallas.3} parent=5 // pred_fallthru
        _
    $region6: #{dcgan_g_forward_pallas.3} parent=1 // loop_footer
      %s17 = sadd.s32 1, %s13
    $region7: #{dcgan_g_forward_pallas.3} parent=1 // loop_footer_branch
      %12 = sbr.rel target = $region3
    $region8: #{dcgan_g_forward_pallas.3} parent=1 // loop_exit
      _
    %438 = vsyncpa [#allocation5], 1
    %s439 = scalar_lea.sflag [#allocation5], 1
    %440 = vsyncpa %s439, 1

// kernel: dcgan_g_forward_pallas.4
$region0: #{dcgan_g_forward_pallas.4}
  #allocation0 [shape = 'u32[]', space=smem, size = 0x4, offset = 0x4, fixed_abs, tag = 'smem constant byte address 0x4 - core index']
  #allocation1 [shape = 'u32[72,128]{1,0:T(1,128)}', space=vmem, size = 0x9000, scoped, tag = 'internal scratch']
  #allocation2 [shape = 'f32[1,128]{1,0:T(1,128)}', space=vmem, size = 0x200, scoped, tag = 'scratch operand']
  #allocation3 [shape = 'f32[1,128]{1,0:T(1,128)}', space=vmem, size = 0x200, scoped, tag = 'scratch operand']
  %s0 = inlined_call_operand.vmem [shape: f32[4,32,512], index: 0, kind: input, shape index: {}]
  %s1 = inlined_call_operand.vmem [shape: bf16[4,512,128], index: 1, kind: input, shape index: {}]
  %s2 = inlined_call_operand.vmem [shape: f32[1,128], index: 2, kind: input, shape index: {}]
  %s3 = inlined_call_operand.vmem [shape: f32[1,128], index: 3, kind: input, shape index: {}]
  %s4 = inlined_call_operand.vmem [shape: f32[4,32,128], index: 4, kind: output, shape index: {}]
  %s5 = sld [smem:[#allocation0]]
  $region57: #{dcgan_g_forward_pallas.4} parent=0
    _
  %s7 = ssub.s32 1, %s5
  %s8 = scalar_select 0, %s7, %s5
  loop: start=0, step=1, limit=6
  $region2: #{dcgan_g_forward_pallas.4} parent=0 // loop_pre_header
    _
  $region3: #{dcgan_g_forward_pallas.4} parent=0 // loop_header
    %s10 = sphi 0, %s14
    %p11 = scmp.ge.s32.totalorder %s10, 6
    %s20 = sphi 0, %s22
    %s23 = sphi 0, %s20
    %s24 = sphi 0, %s23
    %s40 = sphi 0, %s24
    %s46 = sphi 0, %s48
    %s49 = sphi 0, %s46
    %s50 = sphi 0, %s49
    %s66 = sphi 0, %s50
    %s70 = sphi 0, %s70
    %s72 = sphi 0, %s70
    %s73 = sphi 0, %s72
    %s87 = sphi 0, %s73
    %s91 = sphi 0, %s91
    %s93 = sphi 0, %s91
    %s94 = sphi 0, %s93
    %s108 = sphi 0, %s94
    %s112 = sphi 0, %s112
    %s114 = sphi 0, %s112
    %s115 = sphi 0, %s114
    %s129 = sphi 0, %s115
  $region4: #{dcgan_g_forward_pallas.4} parent=0 // loop_header_branch
    %13 = sbr.rel (%p11) target = $region8
  $region5: #{dcgan_g_forward_pallas.4} parent=0 // loop_body
    %s15 = ssub.s32 %s10, 1
    %s16 = ssub.s32 %s10, 2
    %s17 = sadd.s32 %s10, 1
    %s18 = ssub.s32 %s10, %s17
    %p19 = scmp.eq.s32.totalorder %s18, 0
    %s21 = sadd.s32 %s20, 1
    %s22 = scalar_select %p19, %s20, %s21
    %p25 = pneg %p19
    %p26 = scmp.eq.s32.totalorder %s10, 3
    %p27 = por %p25, %p26
    %p28 = scmp.ne.s32.totalorder %s20, %s23
    %p29 = scmp.eq.s32.totalorder %s10, 0
    %p30 = por %p28, %p29
    %p31 = scmp.ne.s32.totalorder %s20, %s23
    %p32 = scmp.eq.s32.totalorder %s15, 3
    %p33 = por %p31, %p32
    %p34 = scmp.ne.s32.totalorder %s23, %s24
    %p35 = scmp.eq.s32.totalorder %s15, 0
    %p36 = por %p34, %p35
    %p37 = scmp.ne.s32.totalorder %s23, %s24
    %p38 = scmp.eq.s32.totalorder %s16, 3
    %p39 = por %p37, %p38
    %p41 = scmp.ne.s32.totalorder %s24, %s40
    %p42 = scmp.eq.s32.totalorder %s16, 0
    %p43 = por %p41, %p42
    %s44 = ssub.s32 %s10, %s17
    %p45 = scmp.eq.s32.totalorder %s44, 0
    %s47 = sadd.s32 %s46, 1
    %s48 = scalar_select %p45, %s46, %s47
    %p51 = pneg %p45
    %p52 = scmp.eq.s32.totalorder %s10, 3
    %p53 = por %p51, %p52
    %p54 = scmp.ne.s32.totalorder %s46, %s49
    %p55 = scmp.eq.s32.totalorder %s10, 0
    %p56 = por %p54, %p55
    %p57 = scmp.ne.s32.totalorder %s46, %s49
    %p58 = scmp.eq.s32.totalorder %s15, 3
    %p59 = por %p57, %p58
    %p60 = scmp.ne.s32.totalorder %s49, %s50
    %p61 = scmp.eq.s32.totalorder %s15, 0
    %p62 = por %p60, %p61
    %p63 = scmp.ne.s32.totalorder %s49, %s50
    %p64 = scmp.eq.s32.totalorder %s16, 3
    %p65 = por %p63, %p64
    %p67 = scmp.ne.s32.totalorder %s50, %s66
    %p68 = scmp.eq.s32.totalorder %s16, 0
    %p69 = por %p67, %p68
    %s71 = sadd.s32 %s70, 1
    %p74 = scmp.eq.s32.totalorder %s10, 3
    %p75 = scmp.ne.s32.totalorder %s70, %s72
    %p76 = scmp.eq.s32.totalorder %s10, 0
    %p77 = por %p75, %p76
    %p78 = scmp.ne.s32.totalorder %s70, %s72
    %p79 = scmp.eq.s32.totalorder %s15, 3
    %p80 = por %p78, %p79
    %p81 = scmp.ne.s32.totalorder %s72, %s73
    %p82 = scmp.eq.s32.totalorder %s15, 0
    %p83 = por %p81, %p82
    %p84 = scmp.ne.s32.totalorder %s72, %s73
    %p85 = scmp.eq.s32.totalorder %s16, 3
    %p86 = por %p84, %p85
    %p88 = scmp.ne.s32.totalorder %s73, %s87
    %p89 = scmp.eq.s32.totalorder %s16, 0
    %p90 = por %p88, %p89
    %s92 = sadd.s32 %s91, 1
    %p95 = scmp.eq.s32.totalorder %s10, 3
    %p96 = scmp.ne.s32.totalorder %s91, %s93
    %p97 = scmp.eq.s32.totalorder %s10, 0
    %p98 = por %p96, %p97
    %p99 = scmp.ne.s32.totalorder %s91, %s93
    %p100 = scmp.eq.s32.totalorder %s15, 3
    %p101 = por %p99, %p100
    %p102 = scmp.ne.s32.totalorder %s93, %s94
    %p103 = scmp.eq.s32.totalorder %s15, 0
    %p104 = por %p102, %p103
    %p105 = scmp.ne.s32.totalorder %s93, %s94
    %p106 = scmp.eq.s32.totalorder %s16, 3
    %p107 = por %p105, %p106
    %p109 = scmp.ne.s32.totalorder %s94, %s108
    %p110 = scmp.eq.s32.totalorder %s16, 0
    %p111 = por %p109, %p110
    %s113 = sadd.s32 %s112, 1
    %p116 = scmp.eq.s32.totalorder %s10, 3
    %p117 = scmp.ne.s32.totalorder %s112, %s114
    %p118 = scmp.eq.s32.totalorder %s10, 0
    %p119 = por %p117, %p118
    %p120 = scmp.ne.s32.totalorder %s112, %s114
    %p121 = scmp.eq.s32.totalorder %s15, 3
    %p122 = por %p120, %p121
    %p123 = scmp.ne.s32.totalorder %s114, %s115
    %p124 = scmp.eq.s32.totalorder %s15, 0
    %p125 = por %p123, %p124
    %p126 = scmp.ne.s32.totalorder %s114, %s115
    %p127 = scmp.eq.s32.totalorder %s16, 3
    %p128 = por %p126, %p127
    %p130 = scmp.ne.s32.totalorder %s115, %s129
    %p131 = scmp.eq.s32.totalorder %s16, 0
    %p132 = por %p130, %p131
    %p133 = scmp.le.s32.totalorder 1, %s10
    %p134 = scmp.lt.s32.totalorder %s10, 5
    %p135 = pnand %p133, %p134
    %p136 = pneg %p135
    // Predicated region
    $region9: #{dcgan_g_forward_pallas.4} parent=5 // pred_check
      _
    $region10: #{dcgan_g_forward_pallas.4} parent=5 // pred_check_branch
      %138 = sbr.rel (%p135) target = $region12
    $region11: #{dcgan_g_forward_pallas.4} parent=5 // pred_region
      %s139 = ssub.s32 %s10, 1
      // Predicated region
      $region13: #{dcgan_g_forward_pallas.4} parent=11 // pred_check
        %p140 = pneg %p83
      $region14: #{dcgan_g_forward_pallas.4} parent=11 // pred_check_branch
        %142 = sbr.rel (%p140) target = $region16
      $region15: #{dcgan_g_forward_pallas.4} parent=11 // pred_region
        _
      $region16: #{dcgan_g_forward_pallas.4} parent=11 // pred_fallthru
        _
      // Predicated region
      $region17: #{dcgan_g_forward_pallas.4} parent=11 // pred_check
        %p143 = pneg %p104
      $region18: #{dcgan_g_forward_pallas.4} parent=11 // pred_check_branch
        %145 = sbr.rel (%p143) target = $region20
      $region19: #{dcgan_g_forward_pallas.4} parent=11 // pred_region
        _
      $region20: #{dcgan_g_forward_pallas.4} parent=11 // pred_fallthru
        _
    $region12: #{dcgan_g_forward_pallas.4} parent=5 // pred_fallthru
      _
    %p146 = scmp.lt.s32.totalorder %s10, 4
    // Predicated region
    $region21: #{dcgan_g_forward_pallas.4} parent=5 // pred_check
      %p147 = pneg %p146
    $region22: #{dcgan_g_forward_pallas.4} parent=5 // pred_check_branch
      %149 = sbr.rel (%p147) target = $region24
    $region23: #{dcgan_g_forward_pallas.4} parent=5 // pred_region
      // Predicated region
      $region25: #{dcgan_g_forward_pallas.4} parent=23 // pred_check
        %p150 = pneg %p30
      $region26: #{dcgan_g_forward_pallas.4} parent=23 // pred_check_branch
        %152 = sbr.rel (%p150) target = $region28
      $region27: #{dcgan_g_forward_pallas.4} parent=23 // pred_region
        %p153 = scmp.lt.s32.totalorder %s10, 3
        %s154 = scalar_select %p153, %s10, 3
        %s155 = smul.addr %s154, 16
        %s156 = smul.addr %s155, 8
        %s157 = scalar_lea.vmem %s0, %s156
      $region28: #{dcgan_g_forward_pallas.4} parent=23 // pred_fallthru
        _
      // Predicated region
      $region29: #{dcgan_g_forward_pallas.4} parent=23 // pred_check
        %p158 = pneg %p56
      $region30: #{dcgan_g_forward_pallas.4} parent=23 // pred_check_branch
        %160 = sbr.rel (%p158) target = $region32
      $region31: #{dcgan_g_forward_pallas.4} parent=23 // pred_region
        %p161 = scmp.lt.s32.totalorder %s10, 3
        %s162 = scalar_select %p161, %s10, 3
        %s163 = smul.addr %s162, 64
        %s164 = smul.addr %s163, 4
        %s165 = scalar_lea.vmem %s1, %s164
      $region32: #{dcgan_g_forward_pallas.4} parent=23 // pred_fallthru
        _
    $region24: #{dcgan_g_forward_pallas.4} parent=5 // pred_fallthru
      _
    %p166 = scmp.le.s32.totalorder 1, %s10
    %p167 = scmp.lt.s32.totalorder %s10, 5
    %p168 = pnand %p166, %p167
    %p169 = pneg %p168
    // Predicated region
    $region33: #{dcgan_g_forward_pallas.4} parent=5 // pred_check
      _
    $region34: #{dcgan_g_forward_pallas.4} parent=5 // pred_check_branch
      %171 = sbr.rel (%p168) target = $region36
    $region35: #{dcgan_g_forward_pallas.4} parent=5 // pred_region
      %s172 = ssub.s32 %s10, 1
      %p173 = scmp.lt.s32.totalorder %s15, 3
      %s174 = scalar_select %p173, %s15, 3
      %s175 = smul.addr %s174, 16
      %s176 = smul.addr %s175, 8
      %s177 = scalar_lea.vmem %s0, %s176
      %p178 = pneg %p36
      %p179 = pneg %p33
      %p180 = scmp.lt.s32.totalorder %s15, 3
      %s181 = scalar_select %p180, %s15, 3
      %s182 = smul.addr %s181, 64
      %s183 = smul.addr %s182, 4
      %s184 = scalar_lea.vmem %s1, %s183
      %p185 = pneg %p62
      %p186 = pneg %p59
      %p187 = pneg %p83
      %p188 = pneg %p80
      %p189 = pneg %p104
      %p190 = pneg %p101
      %p191 = pneg %p125
      %p192 = pneg %p122
      %p193 = scmp.lt.s32.totalorder %s15, 3
      %s194 = scalar_select %p193, %s15, 3
      %s195 = smul.addr %s194, 16
      %s196 = smul.addr %s195, 8
      %s197 = scalar_lea.vmem %s0, %s196
      %p198 = scmp.lt.s32.totalorder %s15, 3
      %s199 = scalar_select %p198, %s15, 3
      %s200 = smul.addr %s199, 64
      %s201 = smul.addr %s200, 4
      %s202 = scalar_lea.vmem %s1, %s201
      %p203 = scmp.eq.s32.totalorder %s15, 0
      // Predicated region
      $region37: #{dcgan_g_forward_pallas.4} parent=35 // pred_check
        %p204 = pneg %p203
      $region38: #{dcgan_g_forward_pallas.4} parent=35 // pred_check_branch
        %206 = sbr.rel (%p204) target = $region40
      $region39: #{dcgan_g_forward_pallas.4} parent=35 // pred_region
        %207 = vst [vmem:[#allocation2] sm:$0x1] 0.0
        %208 = vst [vmem:[#allocation3] sm:$0x1] 0.0
      $region40: #{dcgan_g_forward_pallas.4} parent=35 // pred_fallthru
        _
      %v209 = vld [vmem:[%s197] sm:$0xff]
      %v210 = vld [vmem:[%s197 + $0x8] sm:$0xff]
      %v211 = vld [vmem:[%s197 + $0x10] sm:$0xff]
      %v212 = vld [vmem:[%s197 + $0x18] sm:$0xff]
      %v213 = vld [vmem:[%s197 + $0x20] sm:$0xff]
      %v214 = vld [vmem:[%s197 + $0x28] sm:$0xff]
      %v215 = vld [vmem:[%s197 + $0x30] sm:$0xff]
      %v216 = vld [vmem:[%s197 + $0x38] sm:$0xff]
      %v217 = vld [vmem:[%s197 + $0x40] sm:$0xff]
      %v218 = vld [vmem:[%s197 + $0x48] sm:$0xff]
      %v219 = vld [vmem:[%s197 + $0x50] sm:$0xff]
      %v220 = vld [vmem:[%s197 + $0x58] sm:$0xff]
      %v221 = vld [vmem:[%s197 + $0x60] sm:$0xff]
      %v222 = vld [vmem:[%s197 + $0x68] sm:$0xff]
      %v223 = vld [vmem:[%s197 + $0x70] sm:$0xff]
      %v224 = vld [vmem:[%s197 + $0x78] sm:$0xff]
      %v225 = vpack.c.bf16 %v213, %v209
      %v226 = vpack.c.bf16 %v214, %v210
      %v227 = vpack.c.bf16 %v215, %v211
      %v228 = vpack.c.bf16 %v216, %v212
      %v229 = vpack.c.bf16 %v221, %v217
      %v230 = vpack.c.bf16 %v222, %v218
      %v231 = vpack.c.bf16 %v223, %v219
      %v232 = vpack.c.bf16 %v224, %v220
      %v233 = vld [vmem:[%s202] sm:$0xf]
      %v234 = vld [vmem:[%s202 + $0x4] sm:$0xf]
      %v235 = vld [vmem:[%s202 + $0x8] sm:$0xf]
      %v236 = vld [vmem:[%s202 + $0xc] sm:$0xf]
      %v237 = vld [vmem:[%s202 + $0x10] sm:$0xf]
      %v238 = vld [vmem:[%s202 + $0x14] sm:$0xf]
      %v239 = vld [vmem:[%s202 + $0x18] sm:$0xf]
      %v240 = vld [vmem:[%s202 + $0x1c] sm:$0xf]
      %v241 = vld [vmem:[%s202 + $0x20] sm:$0xf]
      %v242 = vld [vmem:[%s202 + $0x24] sm:$0xf]
      %v243 = vld [vmem:[%s202 + $0x28] sm:$0xf]
      %v244 = vld [vmem:[%s202 + $0x2c] sm:$0xf]
      %v245 = vld [vmem:[%s202 + $0x30] sm:$0xf]
      %v246 = vld [vmem:[%s202 + $0x34] sm:$0xf]
      %v247 = vld [vmem:[%s202 + $0x38] sm:$0xf]
      %v248 = vld [vmem:[%s202 + $0x3c] sm:$0xf]
      %v249 = vld [vmem:[%s202 + $0x40] sm:$0xf]
      %v250 = vld [vmem:[%s202 + $0x44] sm:$0xf]
      %v251 = vld [vmem:[%s202 + $0x48] sm:$0xf]
      %v252 = vld [vmem:[%s202 + $0x4c] sm:$0xf]
      %v253 = vld [vmem:[%s202 + $0x50] sm:$0xf]
      %v254 = vld [vmem:[%s202 + $0x54] sm:$0xf]
      %v255 = vld [vmem:[%s202 + $0x58] sm:$0xf]
      %v256 = vld [vmem:[%s202 + $0x5c] sm:$0xf]
      %v257 = vld [vmem:[%s202 + $0x60] sm:$0xf]
      %v258 = vld [vmem:[%s202 + $0x64] sm:$0xf]
      %v259 = vld [vmem:[%s202 + $0x68] sm:$0xf]
      %v260 = vld [vmem:[%s202 + $0x6c] sm:$0xf]
      %v261 = vld [vmem:[%s202 + $0x70] sm:$0xf]
      %v262 = vld [vmem:[%s202 + $0x74] sm:$0xf]
      %v263 = vld [vmem:[%s202 + $0x78] sm:$0xf]
      %v264 = vld [vmem:[%s202 + $0x7c] sm:$0xf]
      %v265 = vld [vmem:[%s202 + $0x80] sm:$0xf]
      %v266 = vld [vmem:[%s202 + $0x84] sm:$0xf]
      %v267 = vld [vmem:[%s202 + $0x88] sm:$0xf]
      %v268 = vld [vmem:[%s202 + $0x8c] sm:$0xf]
      %v269 = vld [vmem:[%s202 + $0x90] sm:$0xf]
      %v270 = vld [vmem:[%s202 + $0x94] sm:$0xf]
      %v271 = vld [vmem:[%s202 + $0x98] sm:$0xf]
      %v272 = vld [vmem:[%s202 + $0x9c] sm:$0xf]
      %v273 = vld [vmem:[%s202 + $0xa0] sm:$0xf]
      %v274 = vld [vmem:[%s202 + $0xa4] sm:$0xf]
      %v275 = vld [vmem:[%s202 + $0xa8] sm:$0xf]
      %v276 = vld [vmem:[%s202 + $0xac] sm:$0xf]
      %v277 = vld [vmem:[%s202 + $0xb0] sm:$0xf]
      %v278 = vld [vmem:[%s202 + $0xb4] sm:$0xf]
      %v279 = vld [vmem:[%s202 + $0xb8] sm:$0xf]
      %v280 = vld [vmem:[%s202 + $0xbc] sm:$0xf]
      %v281 = vld [vmem:[%s202 + $0xc0] sm:$0xf]
      %v282 = vld [vmem:[%s202 + $0xc4] sm:$0xf]
      %v283 = vld [vmem:[%s202 + $0xc8] sm:$0xf]
      %v284 = vld [vmem:[%s202 + $0xcc] sm:$0xf]
      %v285 = vld [vmem:[%s202 + $0xd0] sm:$0xf]
      %v286 = vld [vmem:[%s202 + $0xd4] sm:$0xf]
      %v287 = vld [vmem:[%s202 + $0xd8] sm:$0xf]
      %v288 = vld [vmem:[%s202 + $0xdc] sm:$0xf]
      %v289 = vld [vmem:[%s202 + $0xe0] sm:$0xf]
      %v290 = vld [vmem:[%s202 + $0xe4] sm:$0xf]
      %v291 = vld [vmem:[%s202 + $0xe8] sm:$0xf]
      %v292 = vld [vmem:[%s202 + $0xec] sm:$0xf]
      %v293 = vld [vmem:[%s202 + $0xf0] sm:$0xf]
      %v294 = vld [vmem:[%s202 + $0xf4] sm:$0xf]
      %v295 = vld [vmem:[%s202 + $0xf8] sm:$0xf]
      %v296 = vld [vmem:[%s202 + $0xfc] sm:$0xf]
      %v361 = vunpack.c.l.b16 %v233
      %v362 = vunpack.c.l.b16 %v234
      %v363 = vunpack.c.l.b16 %v235
      %v364 = vunpack.c.l.b16 %v236
      %v365 = vunpack.c.l.b16 %v237
      %v366 = vunpack.c.l.b16 %v238
      %v367 = vunpack.c.l.b16 %v239
      %v368 = vunpack.c.l.b16 %v240
      %v369 = vunpack.c.l.b16 %v241
      %v370 = vunpack.c.l.b16 %v242
      %v371 = vunpack.c.l.b16 %v243
      %v372 = vunpack.c.l.b16 %v244
      %v373 = vunpack.c.l.b16 %v245
      %v374 = vunpack.c.l.b16 %v246
      %v375 = vunpack.c.l.b16 %v247
      %v376 = vunpack.c.l.b16 %v248
      %v377 = vunpack.c.l.b16 %v249
      %v378 = vunpack.c.l.b16 %v250
      %v379 = vunpack.c.l.b16 %v251
      %v380 = vunpack.c.l.b16 %v252
      %v381 = vunpack.c.l.b16 %v253
      %v382 = vunpack.c.l.b16 %v254
      %v383 = vunpack.c.l.b16 %v255
      %v384 = vunpack.c.l.b16 %v256
      %v385 = vunpack.c.l.b16 %v257
      %v386 = vunpack.c.l.b16 %v258
      %v387 = vunpack.c.l.b16 %v259
      %v388 = vunpack.c.l.b16 %v260
      %v389 = vunpack.c.l.b16 %v261
      %v390 = vunpack.c.l.b16 %v262
      %v391 = vunpack.c.l.b16 %v263
      %v392 = vunpack.c.l.b16 %v264
      %v393 = vunpack.c.l.b16 %v265
      %v394 = vunpack.c.l.b16 %v266
      %v395 = vunpack.c.l.b16 %v267
      %v396 = vunpack.c.l.b16 %v268
      %v397 = vunpack.c.l.b16 %v269
      %v398 = vunpack.c.l.b16 %v270
      %v399 = vunpack.c.l.b16 %v271
      %v400 = vunpack.c.l.b16 %v272
      %v401 = vunpack.c.l.b16 %v273
      %v402 = vunpack.c.l.b16 %v274
      %v403 = vunpack.c.l.b16 %v275
      %v404 = vunpack.c.l.b16 %v276
      %v405 = vunpack.c.l.b16 %v277
      %v406 = vunpack.c.l.b16 %v278
      %v407 = vunpack.c.l.b16 %v279
      %v408 = vunpack.c.l.b16 %v280
      %v409 = vunpack.c.l.b16 %v281
      %v410 = vunpack.c.l.b16 %v282
      %v411 = vunpack.c.l.b16 %v283
      %v412 = vunpack.c.l.b16 %v284
      %v413 = vunpack.c.l.b16 %v285
      %v414 = vunpack.c.l.b16 %v286
      %v415 = vunpack.c.l.b16 %v287
      %v416 = vunpack.c.l.b16 %v288
      %v417 = vunpack.c.l.b16 %v289
      %v418 = vunpack.c.l.b16 %v290
      %v419 = vunpack.c.l.b16 %v291
      %v420 = vunpack.c.l.b16 %v292
      %v421 = vunpack.c.l.b16 %v293
      %v422 = vunpack.c.l.b16 %v294
      %v423 = vunpack.c.l.b16 %v295
      %v424 = vunpack.c.l.b16 %v296
      %v425 = vpack.c.b16 %v362, %v361
      %v426 = vpack.c.b16 %v364, %v363
      %v427 = vpack.c.b16 %v366, %v365
      %v428 = vpack.c.b16 %v368, %v367
      %v429 = vpack.c.b16 %v370, %v369
      %v430 = vpack.c.b16 %v372, %v371
      %v431 = vpack.c.b16 %v374, %v373
      %v432 = vpack.c.b16 %v376, %v375
      %v433 = vpack.c.b16 %v378, %v377
      %v434 = vpack.c.b16 %v380, %v379
      %v435 = vpack.c.b16 %v382, %v381
      %v436 = vpack.c.b16 %v384, %v383
      %v437 = vpack.c.b16 %v386, %v385
      %v438 = vpack.c.b16 %v388, %v387
      %v439 = vpack.c.b16 %v390, %v389
      %v440 = vpack.c.b16 %v392, %v391
      %v441 = vpack.c.b16 %v394, %v393
      %v442 = vpack.c.b16 %v396, %v395
      %v443 = vpack.c.b16 %v398, %v397
      %v444 = vpack.c.b16 %v400, %v399
      %v445 = vpack.c.b16 %v402, %v401
      %v446 = vpack.c.b16 %v404, %v403
      %v447 = vpack.c.b16 %v406, %v405
      %v448 = vpack.c.b16 %v408, %v407
      %v449 = vpack.c.b16 %v410, %v409
      %v450 = vpack.c.b16 %v412, %v411
      %v451 = vpack.c.b16 %v414, %v413
      %v452 = vpack.c.b16 %v416, %v415
      %v453 = vpack.c.b16 %v418, %v417
      %v454 = vpack.c.b16 %v420, %v419
      %v455 = vpack.c.b16 %v422, %v421
      %v456 = vpack.c.b16 %v424, %v423
      %489 = vmatpush.bf16.msra.mxu0 %v432
      %490 = vmatpush.bf16.msra.mxu0 %v431
      %491 = vmatpush.bf16.msra.mxu0 %v430
      %492 = vmatpush.bf16.msra.mxu0 %v429
      %493 = vmatpush.bf16.msra.mxu0 %v428
      %494 = vmatpush.bf16.msra.mxu0 %v427
      %495 = vmatpush.bf16.msra.mxu0 %v426
      %496 = vmatpush.bf16.msra.mxu0 %v425
      %497 = vmatmul.bf16.gmra.mxu0 %v225
      %v498 = vpop.f32.mrf.mxu0
      %v499 = vadd.f32 0.0, %v498
      %v500 = vpop.f32.mrf.mxu0
      %v501 = vadd.f32 0.0, %v500
      %502 = vmatmul.bf16.gmra.mxu0 %v229
      %v503 = vpop.f32.mrf.mxu0
      %v504 = vadd.f32 0.0, %v503
      %v505 = vpop.f32.mrf.mxu0
      %v506 = vadd.f32 0.0, %v505
      %507 = vdwg.mxu0
      %508 = vmatpush.bf16.msra.mxu0 %v440
      %509 = vmatpush.bf16.msra.mxu0 %v439
      %510 = vmatpush.bf16.msra.mxu0 %v438
      %511 = vmatpush.bf16.msra.mxu0 %v437
      %512 = vmatpush.bf16.msra.mxu0 %v436
      %513 = vmatpush.bf16.msra.mxu0 %v435
      %514 = vmatpush.bf16.msra.mxu0 %v434
      %515 = vmatpush.bf16.msra.mxu0 %v433
      %516 = vmatmul.bf16.gmra.mxu0 %v226
      %v517 = vpop.f32.mrf.mxu0
      %v518 = vadd.f32 %v499, %v517
      %v519 = vpop.f32.mrf.mxu0
      %v520 = vadd.f32 %v501, %v519
      %521 = vmatmul.bf16.gmra.mxu0 %v230
      %v522 = vpop.f32.mrf.mxu0
      %v523 = vadd.f32 %v504, %v522
      %v524 = vpop.f32.mrf.mxu0
      %v525 = vadd.f32 %v506, %v524
      %526 = vdwg.mxu0
      %527 = vmatpush.bf16.msra.mxu0 %v448
      %528 = vmatpush.bf16.msra.mxu0 %v447
      %529 = vmatpush.bf16.msra.mxu0 %v446
      %530 = vmatpush.bf16.msra.mxu0 %v445
      %531 = vmatpush.bf16.msra.mxu0 %v444
      %532 = vmatpush.bf16.msra.mxu0 %v443
      %533 = vmatpush.bf16.msra.mxu0 %v442
      %534 = vmatpush.bf16.msra.mxu0 %v441
      %535 = vmatmul.bf16.gmra.mxu0 %v227
      %v536 = vpop.f32.mrf.mxu0
      %v537 = vadd.f32 %v518, %v536
      %v538 = vpop.f32.mrf.mxu0
      %v539 = vadd.f32 %v520, %v538
      %540 = vmatmul.bf16.gmra.mxu0 %v231
      %v541 = vpop.f32.mrf.mxu0
      %v542 = vadd.f32 %v523, %v541
      %v543 = vpop.f32.mrf.mxu0
      %v544 = vadd.f32 %v525, %v543
      %545 = vdwg.mxu0
      %546 = vmatpush.bf16.msra.mxu0 %v456
      %547 = vmatpush.bf16.msra.mxu0 %v455
      %548 = vmatpush.bf16.msra.mxu0 %v454
      %549 = vmatpush.bf16.msra.mxu0 %v453
      %550 = vmatpush.bf16.msra.mxu0 %v452
      %551 = vmatpush.bf16.msra.mxu0 %v451
      %552 = vmatpush.bf16.msra.mxu0 %v450
      %553 = vmatpush.bf16.msra.mxu0 %v449
      %554 = vmatmul.bf16.gmra.mxu0 %v228
      %v555 = vpop.f32.mrf.mxu0
      %v556 = vadd.f32 %v537, %v555
      %v557 = vpop.f32.mrf.mxu0
      %v558 = vadd.f32 %v539, %v557
      %559 = vmatmul.bf16.gmra.mxu0 %v232
      %v560 = vpop.f32.mrf.mxu0
      %v561 = vadd.f32 %v542, %v560
      %v562 = vpop.f32.mrf.mxu0
      %v563 = vadd.f32 %v544, %v562
      %564 = vdwg.mxu0
      %s565 = smul.u32 %s15, 32
      %s566 = scalar_lea.vmem %s4, %s565
      %567 = vst [vmem:[%s566] sm:$0xff] %v556
      %568 = vst [vmem:[%s566 + $0x8] sm:$0xff] %v558
      %569 = vst [vmem:[%s566 + $0x10] sm:$0xff] %v561
      %570 = vst [vmem:[%s566 + $0x18] sm:$0xff] %v563
      %v571 = vld [vmem:[#allocation2] sm:$0x1]
      %v572 = vadd.f32 %v556, %v558
      %v573 = vadd.f32 %v572, %v561
      %v574 = vadd.f32 %v573, %v563
      %v575 = vrot.slane %v574, 4
      %v576 = vadd.f32 %v574, %v575
      %v577 = vrot.slane %v576, 2
      %v578 = vadd.f32 %v576, %v577
      %v579 = vrot.slane %v578, 1
      %v580 = vadd.f32 %v578, %v579
      %v581 = vadd.f32 %v571, %v580
      %582 = vst [vmem:[#allocation2] sm:$0x1] %v581
      %v583 = vld [vmem:[#allocation3] sm:$0x1]
      %v584 = vmul.f32 %v556, %v556
      %v585 = vmul.f32 %v558, %v558
      %v586 = vmul.f32 %v561, %v561
      %v587 = vmul.f32 %v563, %v563
      %v588 = vadd.f32 %v584, %v585
      %v589 = vadd.f32 %v588, %v586
      %v590 = vadd.f32 %v589, %v587
      %v591 = vrot.slane %v590, 4
      %v592 = vadd.f32 %v590, %v591
      %v593 = vrot.slane %v592, 2
      %v594 = vadd.f32 %v592, %v593
      %v595 = vrot.slane %v594, 1
      %v596 = vadd.f32 %v594, %v595
      %v597 = vadd.f32 %v583, %v596
      %598 = vst [vmem:[#allocation3] sm:$0x1] %v597
      %p599 = scmp.eq.s32.totalorder %s15, 3
      // Predicated region
      $region41: #{dcgan_g_forward_pallas.4} parent=35 // pred_check
        %p600 = pneg %p599
      $region42: #{dcgan_g_forward_pallas.4} parent=35 // pred_check_branch
        %602 = sbr.rel (%p600) target = $region44
      $region43: #{dcgan_g_forward_pallas.4} parent=35 // pred_region
        %v603 = vld [vmem:[#allocation2] sm:$0x1]
        %v604 = vmul.f32 %v603, 0.0078125
        %v605 = vld [vmem:[#allocation3] sm:$0x1]
        %v606 = vmul.f32 %v605, 0.0078125
        %v607 = vmul.f32 %v604, %v604
        %v608 = vsub.f32 %v606, %v607
        %v609 = vadd.f32 %v608, 1e-05
        %v610 = vrsqrt.pop %v609
        %v611 = vmul.f32 %v610, %v609
        %v612 = vmul.f32 %v611, %v610
        %v613 = vmul.f32 0.5, %v612
        %v614 = vsub.f32 1.5, %v613
        %v615 = vmul.f32 %v610, %v614
        %vm616 = vweird.f32 %v609
        %vm617 = vweird.f32 %v610
        %vm618 = vmor %vm616, %vm617
        %v619 = vsel %vm618, %v610, %v615
        %v620 = vld [vmem:[%s2] sm:$0x1]
        %v621 = vmul.f32 %v619, %v620
        %v622 = vld [vmem:[%s3] sm:$0x1]
        %v623 = vmul.f32 %v604, %v621
        %v624 = vsub.f32 %v622, %v623
        %v625 = vld [vmem:[%s4] sm:$0xff]
        %v626 = vld [vmem:[%s4 + $0x8] sm:$0xff]
        %v627 = vld [vmem:[%s4 + $0x10] sm:$0xff]
        %v628 = vld [vmem:[%s4 + $0x18] sm:$0xff]
        %v629 = vld [vmem:[%s4 + $0x20] sm:$0xff]
        %v630 = vld [vmem:[%s4 + $0x28] sm:$0xff]
        %v631 = vld [vmem:[%s4 + $0x30] sm:$0xff]
        %v632 = vld [vmem:[%s4 + $0x38] sm:$0xff]
        %v633 = vld [vmem:[%s4 + $0x40] sm:$0xff]
        %v634 = vld [vmem:[%s4 + $0x48] sm:$0xff]
        %v635 = vld [vmem:[%s4 + $0x50] sm:$0xff]
        %v636 = vld [vmem:[%s4 + $0x58] sm:$0xff]
        %v637 = vld [vmem:[%s4 + $0x60] sm:$0xff]
        %v638 = vld [vmem:[%s4 + $0x68] sm:$0xff]
        %v639 = vld [vmem:[%s4 + $0x70] sm:$0xff]
        %v640 = vld [vmem:[%s4 + $0x78] sm:$0xff]
        %v642 = vperm.slane %v621, 0
        %v644 = vmul.f32 %v625, %v642
        %v645 = vmul.f32 %v626, %v642
        %v646 = vmul.f32 %v627, %v642
        %v647 = vmul.f32 %v628, %v642
        %v648 = vmul.f32 %v629, %v642
        %v649 = vmul.f32 %v630, %v642
        %v650 = vmul.f32 %v631, %v642
        %v651 = vmul.f32 %v632, %v642
        %v652 = vmul.f32 %v633, %v642
        %v653 = vmul.f32 %v634, %v642
        %v654 = vmul.f32 %v635, %v642
        %v655 = vmul.f32 %v636, %v642
        %v656 = vmul.f32 %v637, %v642
        %v657 = vmul.f32 %v638, %v642
        %v658 = vmul.f32 %v639, %v642
        %v659 = vmul.f32 %v640, %v642
        %v661 = vperm.slane %v624, 0
        %v663 = vadd.f32 %v644, %v661
        %v664 = vadd.f32 %v645, %v661
        %v665 = vadd.f32 %v646, %v661
        %v666 = vadd.f32 %v647, %v661
        %v667 = vadd.f32 %v648, %v661
        %v668 = vadd.f32 %v649, %v661
        %v669 = vadd.f32 %v650, %v661
        %v670 = vadd.f32 %v651, %v661
        %v671 = vadd.f32 %v652, %v661
        %v672 = vadd.f32 %v653, %v661
        %v673 = vadd.f32 %v654, %v661
        %v674 = vadd.f32 %v655, %v661
        %v675 = vadd.f32 %v656, %v661
        %v676 = vadd.f32 %v657, %v661
        %v677 = vadd.f32 %v658, %v661
        %v678 = vadd.f32 %v659, %v661
        %v679 = vmax.f32 %v663, 0.0
        %v680 = vmax.f32 %v664, 0.0
        %v681 = vmax.f32 %v665, 0.0
        %v682 = vmax.f32 %v666, 0.0
        %v683 = vmax.f32 %v667, 0.0
        %v684 = vmax.f32 %v668, 0.0
        %v685 = vmax.f32 %v669, 0.0
        %v686 = vmax.f32 %v670, 0.0
        %v687 = vmax.f32 %v671, 0.0
        %v688 = vmax.f32 %v672, 0.0
        %v689 = vmax.f32 %v673, 0.0
        %v690 = vmax.f32 %v674, 0.0
        %v691 = vmax.f32 %v675, 0.0
        %v692 = vmax.f32 %v676, 0.0
        %v693 = vmax.f32 %v677, 0.0
        %v694 = vmax.f32 %v678, 0.0
        %695 = vst [vmem:[%s4] sm:$0xff] %v679
        %696 = vst [vmem:[%s4 + $0x8] sm:$0xff] %v680
        %697 = vst [vmem:[%s4 + $0x10] sm:$0xff] %v681
        %698 = vst [vmem:[%s4 + $0x18] sm:$0xff] %v682
        %699 = vst [vmem:[%s4 + $0x20] sm:$0xff] %v683
        %700 = vst [vmem:[%s4 + $0x28] sm:$0xff] %v684
        %701 = vst [vmem:[%s4 + $0x30] sm:$0xff] %v685
        %702 = vst [vmem:[%s4 + $0x38] sm:$0xff] %v686
        %703 = vst [vmem:[%s4 + $0x40] sm:$0xff] %v687
        %704 = vst [vmem:[%s4 + $0x48] sm:$0xff] %v688
        %705 = vst [vmem:[%s4 + $0x50] sm:$0xff] %v689
        %706 = vst [vmem:[%s4 + $0x58] sm:$0xff] %v690
        %707 = vst [vmem:[%s4 + $0x60] sm:$0xff] %v691
        %708 = vst [vmem:[%s4 + $0x68] sm:$0xff] %v692
        %709 = vst [vmem:[%s4 + $0x70] sm:$0xff] %v693
        %710 = vst [vmem:[%s4 + $0x78] sm:$0xff] %v694
      $region44: #{dcgan_g_forward_pallas.4} parent=35 // pred_fallthru
        _
      // Predicated region
      $region45: #{dcgan_g_forward_pallas.4} parent=35 // pred_check
        %p711 = pneg %p122
      $region46: #{dcgan_g_forward_pallas.4} parent=35 // pred_check_branch
        %713 = sbr.rel (%p711) target = $region48
      $region47: #{dcgan_g_forward_pallas.4} parent=35 // pred_region
        _
      $region48: #{dcgan_g_forward_pallas.4} parent=35 // pred_fallthru
        _
      // Predicated region
      $region49: #{dcgan_g_forward_pallas.4} parent=35 // pred_check
        %p714 = pneg %p122
      $region50: #{dcgan_g_forward_pallas.4} parent=35 // pred_check_branch
        %716 = sbr.rel (%p714) target = $region52
      $region51: #{dcgan_g_forward_pallas.4} parent=35 // pred_region
        _
      $region52: #{dcgan_g_forward_pallas.4} parent=35 // pred_fallthru
        _
    $region36: #{dcgan_g_forward_pallas.4} parent=5 // pred_fallthru
      _
    %p717 = scmp.le.s32.totalorder 2, %s10
    // Predicated region
    $region53: #{dcgan_g_forward_pallas.4} parent=5 // pred_check
      %p718 = pneg %p717
    $region54: #{dcgan_g_forward_pallas.4} parent=5 // pred_check_branch
      %720 = sbr.rel (%p718) target = $region56
    $region55: #{dcgan_g_forward_pallas.4} parent=5 // pred_region
      %s721 = ssub.s32 %s10, 2
    $region56: #{dcgan_g_forward_pallas.4} parent=5 // pred_fallthru
      _
  $region6: #{dcgan_g_forward_pallas.4} parent=0 // loop_footer
    %s14 = sadd.s32 1, %s10
  $region7: #{dcgan_g_forward_pallas.4} parent=0 // loop_footer_branch
    %9 = sbr.rel target = $region3
  $region8: #{dcgan_g_forward_pallas.4} parent=0 // loop_exit
    _

// kernel: dcgan_g_forward_pallas.5
$region0: #{dcgan_g_forward_pallas.5}
  #allocation0 [shape = 'u32[]', space=smem, size = 0x4, offset = 0x4, fixed_abs, tag = 'smem constant byte address 0x4 - core index']
  #allocation1 [shape = 'u32[72,128]{1,0:T(1,128)}', space=vmem, size = 0x9000, scoped, tag = 'internal scratch']
  %s0 = inlined_call_operand.vmem [shape: f32[4,128,512], index: 0, kind: input, shape index: {}]
  %s1 = inlined_call_operand.vmem [shape: bf16[4,512,128], index: 1, kind: input, shape index: {}]
  %s2 = inlined_call_operand.vmem [shape: f32[4,128,128], index: 2, kind: output, shape index: {}]
  %s3 = sld [smem:[#allocation0]]
  $region41: #{dcgan_g_forward_pallas.5} parent=0
    _
  %s5 = ssub.s32 1, %s3
  %s6 = scalar_select 0, %s5, %s3
  loop: start=0, step=1, limit=6
  $region2: #{dcgan_g_forward_pallas.5} parent=0 // loop_pre_header
    _
  $region3: #{dcgan_g_forward_pallas.5} parent=0 // loop_header
    %s8 = sphi 0, %s12
    %p9 = scmp.ge.s32.totalorder %s8, 6
    %s18 = sphi 0, %s20
    %s21 = sphi 0, %s18
    %s22 = sphi 0, %s21
    %s38 = sphi 0, %s22
    %s44 = sphi 0, %s46
    %s47 = sphi 0, %s44
    %s48 = sphi 0, %s47
    %s64 = sphi 0, %s48
    %s70 = sphi 0, %s72
    %s73 = sphi 0, %s70
    %s74 = sphi 0, %s73
    %s90 = sphi 0, %s74
  $region4: #{dcgan_g_forward_pallas.5} parent=0 // loop_header_branch
    %11 = sbr.rel (%p9) target = $region8
  $region5: #{dcgan_g_forward_pallas.5} parent=0 // loop_body
    %s13 = ssub.s32 %s8, 1
    %s14 = ssub.s32 %s8, 2
    %s15 = sadd.s32 %s8, 1
    %s16 = ssub.s32 %s8, %s15
    %p17 = scmp.eq.s32.totalorder %s16, 0
    %s19 = sadd.s32 %s18, 1
    %s20 = scalar_select %p17, %s18, %s19
    %p23 = pneg %p17
    %p24 = scmp.eq.s32.totalorder %s8, 3
    %p25 = por %p23, %p24
    %p26 = scmp.ne.s32.totalorder %s18, %s21
    %p27 = scmp.eq.s32.totalorder %s8, 0
    %p28 = por %p26, %p27
    %p29 = scmp.ne.s32.totalorder %s18, %s21
    %p30 = scmp.eq.s32.totalorder %s13, 3
    %p31 = por %p29, %p30
    %p32 = scmp.ne.s32.totalorder %s21, %s22
    %p33 = scmp.eq.s32.totalorder %s13, 0
    %p34 = por %p32, %p33
    %p35 = scmp.ne.s32.totalorder %s21, %s22
    %p36 = scmp.eq.s32.totalorder %s14, 3
    %p37 = por %p35, %p36
    %p39 = scmp.ne.s32.totalorder %s22, %s38
    %p40 = scmp.eq.s32.totalorder %s14, 0
    %p41 = por %p39, %p40
    %s42 = ssub.s32 %s8, %s15
    %p43 = scmp.eq.s32.totalorder %s42, 0
    %s45 = sadd.s32 %s44, 1
    %s46 = scalar_select %p43, %s44, %s45
    %p49 = pneg %p43
    %p50 = scmp.eq.s32.totalorder %s8, 3
    %p51 = por %p49, %p50
    %p52 = scmp.ne.s32.totalorder %s44, %s47
    %p53 = scmp.eq.s32.totalorder %s8, 0
    %p54 = por %p52, %p53
    %p55 = scmp.ne.s32.totalorder %s44, %s47
    %p56 = scmp.eq.s32.totalorder %s13, 3
    %p57 = por %p55, %p56
    %p58 = scmp.ne.s32.totalorder %s47, %s48
    %p59 = scmp.eq.s32.totalorder %s13, 0
    %p60 = por %p58, %p59
    %p61 = scmp.ne.s32.totalorder %s47, %s48
    %p62 = scmp.eq.s32.totalorder %s14, 3
    %p63 = por %p61, %p62
    %p65 = scmp.ne.s32.totalorder %s48, %s64
    %p66 = scmp.eq.s32.totalorder %s14, 0
    %p67 = por %p65, %p66
    %s68 = ssub.s32 %s8, %s15
    %p69 = scmp.eq.s32.totalorder %s68, 0
    %s71 = sadd.s32 %s70, 1
    %s72 = scalar_select %p69, %s70, %s71
    %p75 = pneg %p69
    %p76 = scmp.eq.s32.totalorder %s8, 3
    %p77 = por %p75, %p76
    %p78 = scmp.ne.s32.totalorder %s70, %s73
    %p79 = scmp.eq.s32.totalorder %s8, 0
    %p80 = por %p78, %p79
    %p81 = scmp.ne.s32.totalorder %s70, %s73
    %p82 = scmp.eq.s32.totalorder %s13, 3
    %p83 = por %p81, %p82
    %p84 = scmp.ne.s32.totalorder %s73, %s74
    %p85 = scmp.eq.s32.totalorder %s13, 0
    %p86 = por %p84, %p85
    %p87 = scmp.ne.s32.totalorder %s73, %s74
    %p88 = scmp.eq.s32.totalorder %s14, 3
    %p89 = por %p87, %p88
    %p91 = scmp.ne.s32.totalorder %s74, %s90
    %p92 = scmp.eq.s32.totalorder %s14, 0
    %p93 = por %p91, %p92
    %p94 = scmp.le.s32.totalorder 1, %s8
    %p95 = scmp.lt.s32.totalorder %s8, 5
    %p96 = pnand %p94, %p95
    %p97 = pneg %p96
    // Predicated region
    $region9: #{dcgan_g_forward_pallas.5} parent=5 // pred_check
      _
    $region10: #{dcgan_g_forward_pallas.5} parent=5 // pred_check_branch
      %99 = sbr.rel (%p96) target = $region12
    $region11: #{dcgan_g_forward_pallas.5} parent=5 // pred_region
      %s100 = ssub.s32 %s8, 1
    $region12: #{dcgan_g_forward_pallas.5} parent=5 // pred_fallthru
      _
    %p101 = scmp.lt.s32.totalorder %s8, 4
    // Predicated region
    $region13: #{dcgan_g_forward_pallas.5} parent=5 // pred_check
      %p102 = pneg %p101
    $region14: #{dcgan_g_forward_pallas.5} parent=5 // pred_check_branch
      %104 = sbr.rel (%p102) target = $region16
    $region15: #{dcgan_g_forward_pallas.5} parent=5 // pred_region
      // Predicated region
      $region17: #{dcgan_g_forward_pallas.5} parent=15 // pred_check
        %p105 = pneg %p28
      $region18: #{dcgan_g_forward_pallas.5} parent=15 // pred_check_branch
        %107 = sbr.rel (%p105) target = $region20
      $region19: #{dcgan_g_forward_pallas.5} parent=15 // pred_region
        %p108 = scmp.lt.s32.totalorder %s8, 3
        %s109 = scalar_select %p108, %s8, 3
        %s110 = smul.addr %s109, 64
        %s111 = smul.addr %s110, 8
        %s112 = scalar_lea.vmem %s0, %s111
      $region20: #{dcgan_g_forward_pallas.5} parent=15 // pred_fallthru
        _
      // Predicated region
      $region21: #{dcgan_g_forward_pallas.5} parent=15 // pred_check
        %p113 = pneg %p54
      $region22: #{dcgan_g_forward_pallas.5} parent=15 // pred_check_branch
        %115 = sbr.rel (%p113) target = $region24
      $region23: #{dcgan_g_forward_pallas.5} parent=15 // pred_region
        %p116 = scmp.lt.s32.totalorder %s8, 3
        %s117 = scalar_select %p116, %s8, 3
        %s118 = smul.addr %s117, 64
        %s119 = smul.addr %s118, 4
        %s120 = scalar_lea.vmem %s1, %s119
      $region24: #{dcgan_g_forward_pallas.5} parent=15 // pred_fallthru
        _
    $region16: #{dcgan_g_forward_pallas.5} parent=5 // pred_fallthru
      _
    %p121 = scmp.le.s32.totalorder 1, %s8
    %p122 = scmp.lt.s32.totalorder %s8, 5
    %p123 = pnand %p121, %p122
    %p124 = pneg %p123
    // Predicated region
    $region25: #{dcgan_g_forward_pallas.5} parent=5 // pred_check
      _
    $region26: #{dcgan_g_forward_pallas.5} parent=5 // pred_check_branch
      %126 = sbr.rel (%p123) target = $region28
    $region27: #{dcgan_g_forward_pallas.5} parent=5 // pred_region
      %s127 = ssub.s32 %s8, 1
      %p128 = scmp.lt.s32.totalorder %s13, 3
      %s129 = scalar_select %p128, %s13, 3
      %s130 = smul.addr %s129, 64
      %s131 = smul.addr %s130, 8
      %s132 = scalar_lea.vmem %s0, %s131
      %p133 = pneg %p34
      %p134 = pneg %p31
      %p135 = scmp.lt.s32.totalorder %s13, 3
      %s136 = scalar_select %p135, %s13, 3
      %s137 = smul.addr %s136, 64
      %s138 = smul.addr %s137, 4
      %s139 = scalar_lea.vmem %s1, %s138
      %p140 = pneg %p60
      %p141 = pneg %p57
      %p142 = pneg %p86
      %p143 = pneg %p83
      %p144 = scmp.lt.s32.totalorder %s13, 3
      %s145 = scalar_select %p144, %s13, 3
      %s146 = smul.addr %s145, 16
      %s147 = smul.addr %s146, 8
      %s148 = scalar_lea.vmem %s2, %s147
      %p149 = scmp.lt.s32.totalorder %s13, 3
      %s150 = scalar_select %p149, %s13, 3
      %s151 = smul.addr %s150, 64
      %s152 = smul.addr %s151, 8
      %s153 = scalar_lea.vmem %s0, %s152
      %p154 = scmp.lt.s32.totalorder %s13, 3
      %s155 = scalar_select %p154, %s13, 3
      %s156 = smul.addr %s155, 64
      %s157 = smul.addr %s156, 4
      %s158 = scalar_lea.vmem %s1, %s157
      %p159 = scmp.lt.s32.totalorder %s13, 3
      %s160 = scalar_select %p159, %s13, 3
      %s161 = smul.addr %s160, 16
      %s162 = smul.addr %s161, 8
      %s163 = scalar_lea.vmem %s2, %s162
      %v164 = vld [vmem:[%s153] sm:$0xff]
      %v165 = vld [vmem:[%s153 + $0x8] sm:$0xff]
      %v166 = vld [vmem:[%s153 + $0x10] sm:$0xff]
      %v167 = vld [vmem:[%s153 + $0x18] sm:$0xff]
      %v168 = vld [vmem:[%s153 + $0x20] sm:$0xff]
      %v169 = vld [vmem:[%s153 + $0x28] sm:$0xff]
      %v170 = vld [vmem:[%s153 + $0x30] sm:$0xff]
      %v171 = vld [vmem:[%s153 + $0x38] sm:$0xff]
      %v172 = vld [vmem:[%s153 + $0x40] sm:$0xff]
      %v173 = vld [vmem:[%s153 + $0x48] sm:$0xff]
      %v174 = vld [vmem:[%s153 + $0x50] sm:$0xff]
      %v175 = vld [vmem:[%s153 + $0x58] sm:$0xff]
      %v176 = vld [vmem:[%s153 + $0x60] sm:$0xff]
      %v177 = vld [vmem:[%s153 + $0x68] sm:$0xff]
      %v178 = vld [vmem:[%s153 + $0x70] sm:$0xff]
      %v179 = vld [vmem:[%s153 + $0x78] sm:$0xff]
      %v180 = vld [vmem:[%s153 + $0x80] sm:$0xff]
      %v181 = vld [vmem:[%s153 + $0x88] sm:$0xff]
      %v182 = vld [vmem:[%s153 + $0x90] sm:$0xff]
      %v183 = vld [vmem:[%s153 + $0x98] sm:$0xff]
      %v184 = vld [vmem:[%s153 + $0xa0] sm:$0xff]
      %v185 = vld [vmem:[%s153 + $0xa8] sm:$0xff]
      %v186 = vld [vmem:[%s153 + $0xb0] sm:$0xff]
      %v187 = vld [vmem:[%s153 + $0xb8] sm:$0xff]
      %v188 = vld [vmem:[%s153 + $0xc0] sm:$0xff]
      %v189 = vld [vmem:[%s153 + $0xc8] sm:$0xff]
      %v190 = vld [vmem:[%s153 + $0xd0] sm:$0xff]
      %v191 = vld [vmem:[%s153 + $0xd8] sm:$0xff]
      %v192 = vld [vmem:[%s153 + $0xe0] sm:$0xff]
      %v193 = vld [vmem:[%s153 + $0xe8] sm:$0xff]
      %v194 = vld [vmem:[%s153 + $0xf0] sm:$0xff]
      %v195 = vld [vmem:[%s153 + $0xf8] sm:$0xff]
      %v196 = vld [vmem:[%s153 + $0x100] sm:$0xff]
      %v197 = vld [vmem:[%s153 + $0x108] sm:$0xff]
      %v198 = vld [vmem:[%s153 + $0x110] sm:$0xff]
      %v199 = vld [vmem:[%s153 + $0x118] sm:$0xff]
      %v200 = vld [vmem:[%s153 + $0x120] sm:$0xff]
      %v201 = vld [vmem:[%s153 + $0x128] sm:$0xff]
      %v202 = vld [vmem:[%s153 + $0x130] sm:$0xff]
      %v203 = vld [vmem:[%s153 + $0x138] sm:$0xff]
      %v204 = vld [vmem:[%s153 + $0x140] sm:$0xff]
      %v205 = vld [vmem:[%s153 + $0x148] sm:$0xff]
      %v206 = vld [vmem:[%s153 + $0x150] sm:$0xff]
      %v207 = vld [vmem:[%s153 + $0x158] sm:$0xff]
      %v208 = vld [vmem:[%s153 + $0x160] sm:$0xff]
      %v209 = vld [vmem:[%s153 + $0x168] sm:$0xff]
      %v210 = vld [vmem:[%s153 + $0x170] sm:$0xff]
      %v211 = vld [vmem:[%s153 + $0x178] sm:$0xff]
      %v212 = vld [vmem:[%s153 + $0x180] sm:$0xff]
      %v213 = vld [vmem:[%s153 + $0x188] sm:$0xff]
      %v214 = vld [vmem:[%s153 + $0x190] sm:$0xff]
      %v215 = vld [vmem:[%s153 + $0x198] sm:$0xff]
      %v216 = vld [vmem:[%s153 + $0x1a0] sm:$0xff]
      %v217 = vld [vmem:[%s153 + $0x1a8] sm:$0xff]
      %v218 = vld [vmem:[%s153 + $0x1b0] sm:$0xff]
      %v219 = vld [vmem:[%s153 + $0x1b8] sm:$0xff]
      %v220 = vld [vmem:[%s153 + $0x1c0] sm:$0xff]
      %v221 = vld [vmem:[%s153 + $0x1c8] sm:$0xff]
      %v222 = vld [vmem:[%s153 + $0x1d0] sm:$0xff]
      %v223 = vld [vmem:[%s153 + $0x1d8] sm:$0xff]
      %v224 = vld [vmem:[%s153 + $0x1e0] sm:$0xff]
      %v225 = vld [vmem:[%s153 + $0x1e8] sm:$0xff]
      %v226 = vld [vmem:[%s153 + $0x1f0] sm:$0xff]
      %v227 = vld [vmem:[%s153 + $0x1f8] sm:$0xff]
      %v228 = vpack.c.bf16 %v168, %v164
      %v229 = vpack.c.bf16 %v169, %v165
      %v230 = vpack.c.bf16 %v170, %v166
      %v231 = vpack.c.bf16 %v171, %v167
      %v232 = vpack.c.bf16 %v176, %v172
      %v233 = vpack.c.bf16 %v177, %v173
      %v234 = vpack.c.bf16 %v178, %v174
      %v235 = vpack.c.bf16 %v179, %v175
      %v236 = vpack.c.bf16 %v184, %v180
      %v237 = vpack.c.bf16 %v185, %v181
      %v238 = vpack.c.bf16 %v186, %v182
      %v239 = vpack.c.bf16 %v187, %v183
      %v240 = vpack.c.bf16 %v192, %v188
      %v241 = vpack.c.bf16 %v193, %v189
      %v242 = vpack.c.bf16 %v194, %v190
      %v243 = vpack.c.bf16 %v195, %v191
      %v244 = vpack.c.bf16 %v200, %v196
      %v245 = vpack.c.bf16 %v201, %v197
      %v246 = vpack.c.bf16 %v202, %v198
      %v247 = vpack.c.bf16 %v203, %v199
      %v248 = vpack.c.bf16 %v208, %v204
      %v249 = vpack.c.bf16 %v209, %v205
      %v250 = vpack.c.bf16 %v210, %v206
      %v251 = vpack.c.bf16 %v211, %v207
      %v252 = vpack.c.bf16 %v216, %v212
      %v253 = vpack.c.bf16 %v217, %v213
      %v254 = vpack.c.bf16 %v218, %v214
      %v255 = vpack.c.bf16 %v219, %v215
      %v256 = vpack.c.bf16 %v224, %v220
      %v257 = vpack.c.bf16 %v225, %v221
      %v258 = vpack.c.bf16 %v226, %v222
      %v259 = vpack.c.bf16 %v227, %v223
      %v260 = vld [vmem:[%s158] sm:$0xf]
      %v261 = vld [vmem:[%s158 + $0x4] sm:$0xf]
      %v262 = vld [vmem:[%s158 + $0x8] sm:$0xf]
      %v263 = vld [vmem:[%s158 + $0xc] sm:$0xf]
      %v264 = vld [vmem:[%s158 + $0x10] sm:$0xf]
      %v265 = vld [vmem:[%s158 + $0x14] sm:$0xf]
      %v266 = vld [vmem:[%s158 + $0x18] sm:$0xf]
      %v267 = vld [vmem:[%s158 + $0x1c] sm:$0xf]
      %v268 = vld [vmem:[%s158 + $0x20] sm:$0xf]
      %v269 = vld [vmem:[%s158 + $0x24] sm:$0xf]
      %v270 = vld [vmem:[%s158 + $0x28] sm:$0xf]
      %v271 = vld [vmem:[%s158 + $0x2c] sm:$0xf]
      %v272 = vld [vmem:[%s158 + $0x30] sm:$0xf]
      %v273 = vld [vmem:[%s158 + $0x34] sm:$0xf]
      %v274 = vld [vmem:[%s158 + $0x38] sm:$0xf]
      %v275 = vld [vmem:[%s158 + $0x3c] sm:$0xf]
      %v276 = vld [vmem:[%s158 + $0x40] sm:$0xf]
      %v277 = vld [vmem:[%s158 + $0x44] sm:$0xf]
      %v278 = vld [vmem:[%s158 + $0x48] sm:$0xf]
      %v279 = vld [vmem:[%s158 + $0x4c] sm:$0xf]
      %v280 = vld [vmem:[%s158 + $0x50] sm:$0xf]
      %v281 = vld [vmem:[%s158 + $0x54] sm:$0xf]
      %v282 = vld [vmem:[%s158 + $0x58] sm:$0xf]
      %v283 = vld [vmem:[%s158 + $0x5c] sm:$0xf]
      %v284 = vld [vmem:[%s158 + $0x60] sm:$0xf]
      %v285 = vld [vmem:[%s158 + $0x64] sm:$0xf]
      %v286 = vld [vmem:[%s158 + $0x68] sm:$0xf]
      %v287 = vld [vmem:[%s158 + $0x6c] sm:$0xf]
      %v288 = vld [vmem:[%s158 + $0x70] sm:$0xf]
      %v289 = vld [vmem:[%s158 + $0x74] sm:$0xf]
      %v290 = vld [vmem:[%s158 + $0x78] sm:$0xf]
      %v291 = vld [vmem:[%s158 + $0x7c] sm:$0xf]
      %v292 = vld [vmem:[%s158 + $0x80] sm:$0xf]
      %v293 = vld [vmem:[%s158 + $0x84] sm:$0xf]
      %v294 = vld [vmem:[%s158 + $0x88] sm:$0xf]
      %v295 = vld [vmem:[%s158 + $0x8c] sm:$0xf]
      %v296 = vld [vmem:[%s158 + $0x90] sm:$0xf]
      %v297 = vld [vmem:[%s158 + $0x94] sm:$0xf]
      %v298 = vld [vmem:[%s158 + $0x98] sm:$0xf]
      %v299 = vld [vmem:[%s158 + $0x9c] sm:$0xf]
      %v300 = vld [vmem:[%s158 + $0xa0] sm:$0xf]
      %v301 = vld [vmem:[%s158 + $0xa4] sm:$0xf]
      %v302 = vld [vmem:[%s158 + $0xa8] sm:$0xf]
      %v303 = vld [vmem:[%s158 + $0xac] sm:$0xf]
      %v304 = vld [vmem:[%s158 + $0xb0] sm:$0xf]
      %v305 = vld [vmem:[%s158 + $0xb4] sm:$0xf]
      %v306 = vld [vmem:[%s158 + $0xb8] sm:$0xf]
      %v307 = vld [vmem:[%s158 + $0xbc] sm:$0xf]
      %v308 = vld [vmem:[%s158 + $0xc0] sm:$0xf]
      %v309 = vld [vmem:[%s158 + $0xc4] sm:$0xf]
      %v310 = vld [vmem:[%s158 + $0xc8] sm:$0xf]
      %v311 = vld [vmem:[%s158 + $0xcc] sm:$0xf]
      %v312 = vld [vmem:[%s158 + $0xd0] sm:$0xf]
      %v313 = vld [vmem:[%s158 + $0xd4] sm:$0xf]
      %v314 = vld [vmem:[%s158 + $0xd8] sm:$0xf]
      %v315 = vld [vmem:[%s158 + $0xdc] sm:$0xf]
      %v316 = vld [vmem:[%s158 + $0xe0] sm:$0xf]
      %v317 = vld [vmem:[%s158 + $0xe4] sm:$0xf]
      %v318 = vld [vmem:[%s158 + $0xe8] sm:$0xf]
      %v319 = vld [vmem:[%s158 + $0xec] sm:$0xf]
      %v320 = vld [vmem:[%s158 + $0xf0] sm:$0xf]
      %v321 = vld [vmem:[%s158 + $0xf4] sm:$0xf]
      %v322 = vld [vmem:[%s158 + $0xf8] sm:$0xf]
      %v323 = vld [vmem:[%s158 + $0xfc] sm:$0xf]
      %v388 = vunpack.c.l.b16 %v260
      %v389 = vunpack.c.l.b16 %v261
      %v390 = vunpack.c.l.b16 %v262
      %v391 = vunpack.c.l.b16 %v263
      %v392 = vunpack.c.l.b16 %v264
      %v393 = vunpack.c.l.b16 %v265
      %v394 = vunpack.c.l.b16 %v266
      %v395 = vunpack.c.l.b16 %v267
      %v396 = vunpack.c.l.b16 %v268
      %v397 = vunpack.c.l.b16 %v269
      %v398 = vunpack.c.l.b16 %v270
      %v399 = vunpack.c.l.b16 %v271
      %v400 = vunpack.c.l.b16 %v272
      %v401 = vunpack.c.l.b16 %v273
      %v402 = vunpack.c.l.b16 %v274
      %v403 = vunpack.c.l.b16 %v275
      %v404 = vunpack.c.l.b16 %v276
      %v405 = vunpack.c.l.b16 %v277
      %v406 = vunpack.c.l.b16 %v278
      %v407 = vunpack.c.l.b16 %v279
      %v408 = vunpack.c.l.b16 %v280
      %v409 = vunpack.c.l.b16 %v281
      %v410 = vunpack.c.l.b16 %v282
      %v411 = vunpack.c.l.b16 %v283
      %v412 = vunpack.c.l.b16 %v284
      %v413 = vunpack.c.l.b16 %v285
      %v414 = vunpack.c.l.b16 %v286
      %v415 = vunpack.c.l.b16 %v287
      %v416 = vunpack.c.l.b16 %v288
      %v417 = vunpack.c.l.b16 %v289
      %v418 = vunpack.c.l.b16 %v290
      %v419 = vunpack.c.l.b16 %v291
      %v420 = vunpack.c.l.b16 %v292
      %v421 = vunpack.c.l.b16 %v293
      %v422 = vunpack.c.l.b16 %v294
      %v423 = vunpack.c.l.b16 %v295
      %v424 = vunpack.c.l.b16 %v296
      %v425 = vunpack.c.l.b16 %v297
      %v426 = vunpack.c.l.b16 %v298
      %v427 = vunpack.c.l.b16 %v299
      %v428 = vunpack.c.l.b16 %v300
      %v429 = vunpack.c.l.b16 %v301
      %v430 = vunpack.c.l.b16 %v302
      %v431 = vunpack.c.l.b16 %v303
      %v432 = vunpack.c.l.b16 %v304
      %v433 = vunpack.c.l.b16 %v305
      %v434 = vunpack.c.l.b16 %v306
      %v435 = vunpack.c.l.b16 %v307
      %v436 = vunpack.c.l.b16 %v308
      %v437 = vunpack.c.l.b16 %v309
      %v438 = vunpack.c.l.b16 %v310
      %v439 = vunpack.c.l.b16 %v311
      %v440 = vunpack.c.l.b16 %v312
      %v441 = vunpack.c.l.b16 %v313
      %v442 = vunpack.c.l.b16 %v314
      %v443 = vunpack.c.l.b16 %v315
      %v444 = vunpack.c.l.b16 %v316
      %v445 = vunpack.c.l.b16 %v317
      %v446 = vunpack.c.l.b16 %v318
      %v447 = vunpack.c.l.b16 %v319
      %v448 = vunpack.c.l.b16 %v320
      %v449 = vunpack.c.l.b16 %v321
      %v450 = vunpack.c.l.b16 %v322
      %v451 = vunpack.c.l.b16 %v323
      %v452 = vpack.c.b16 %v389, %v388
      %v453 = vpack.c.b16 %v391, %v390
      %v454 = vpack.c.b16 %v393, %v392
      %v455 = vpack.c.b16 %v395, %v394
      %v456 = vpack.c.b16 %v397, %v396
      %v457 = vpack.c.b16 %v399, %v398
      %v458 = vpack.c.b16 %v401, %v400
      %v459 = vpack.c.b16 %v403, %v402
      %v460 = vpack.c.b16 %v405, %v404
      %v461 = vpack.c.b16 %v407, %v406
      %v462 = vpack.c.b16 %v409, %v408
      %v463 = vpack.c.b16 %v411, %v410
      %v464 = vpack.c.b16 %v413, %v412
      %v465 = vpack.c.b16 %v415, %v414
      %v466 = vpack.c.b16 %v417, %v416
      %v467 = vpack.c.b16 %v419, %v418
      %v468 = vpack.c.b16 %v421, %v420
      %v469 = vpack.c.b16 %v423, %v422
      %v470 = vpack.c.b16 %v425, %v424
      %v471 = vpack.c.b16 %v427, %v426
      %v472 = vpack.c.b16 %v429, %v428
      %v473 = vpack.c.b16 %v431, %v430
      %v474 = vpack.c.b16 %v433, %v432
      %v475 = vpack.c.b16 %v435, %v434
      %v476 = vpack.c.b16 %v437, %v436
      %v477 = vpack.c.b16 %v439, %v438
      %v478 = vpack.c.b16 %v441, %v440
      %v479 = vpack.c.b16 %v443, %v442
      %v480 = vpack.c.b16 %v445, %v444
      %v481 = vpack.c.b16 %v447, %v446
      %v482 = vpack.c.b16 %v449, %v448
      %v483 = vpack.c.b16 %v451, %v450
      %516 = vmatpush.bf16.msra.mxu0 %v459
      %517 = vmatpush.bf16.msra.mxu0 %v458
      %518 = vmatpush.bf16.msra.mxu0 %v457
      %519 = vmatpush.bf16.msra.mxu0 %v456
      %520 = vmatpush.bf16.msra.mxu0 %v455
      %521 = vmatpush.bf16.msra.mxu0 %v454
      %522 = vmatpush.bf16.msra.mxu0 %v453
      %523 = vmatpush.bf16.msra.mxu0 %v452
      %524 = vmatmul.bf16.gmra.mxu0 %v228
      %v525 = vpop.f32.mrf.mxu0
      %v526 = vadd.f32 0.0, %v525
      %v527 = vpop.f32.mrf.mxu0
      %v528 = vadd.f32 0.0, %v527
      %529 = vmatmul.bf16.gmra.mxu0 %v232
      %v530 = vpop.f32.mrf.mxu0
      %v531 = vadd.f32 0.0, %v530
      %v532 = vpop.f32.mrf.mxu0
      %v533 = vadd.f32 0.0, %v532
      %534 = vmatmul.bf16.gmra.mxu0 %v236
      %v535 = vpop.f32.mrf.mxu0
      %v536 = vadd.f32 0.0, %v535
      %v537 = vpop.f32.mrf.mxu0
      %v538 = vadd.f32 0.0, %v537
      %539 = vmatmul.bf16.gmra.mxu0 %v240
      %v540 = vpop.f32.mrf.mxu0
      %v541 = vadd.f32 0.0, %v540
      %v542 = vpop.f32.mrf.mxu0
      %v543 = vadd.f32 0.0, %v542
      %544 = vmatmul.bf16.gmra.mxu0 %v244
      %v545 = vpop.f32.mrf.mxu0
      %v546 = vadd.f32 0.0, %v545
      %v547 = vpop.f32.mrf.mxu0
      %v548 = vadd.f32 0.0, %v547
      %549 = vmatmul.bf16.gmra.mxu0 %v248
      %v550 = vpop.f32.mrf.mxu0
      %v551 = vadd.f32 0.0, %v550
      %v552 = vpop.f32.mrf.mxu0
      %v553 = vadd.f32 0.0, %v552
      %554 = vmatmul.bf16.gmra.mxu0 %v252
      %v555 = vpop.f32.mrf.mxu0
      %v556 = vadd.f32 0.0, %v555
      %v557 = vpop.f32.mrf.mxu0
      %v558 = vadd.f32 0.0, %v557
      %559 = vmatmul.bf16.gmra.mxu0 %v256
      %v560 = vpop.f32.mrf.mxu0
      %v561 = vadd.f32 0.0, %v560
      %v562 = vpop.f32.mrf.mxu0
      %v563 = vadd.f32 0.0, %v562
      %564 = vdwg.mxu0
      %565 = vmatpush.bf16.msra.mxu0 %v467
      %566 = vmatpush.bf16.msra.mxu0 %v466
      %567 = vmatpush.bf16.msra.mxu0 %v465
      %568 = vmatpush.bf16.msra.mxu0 %v464
      %569 = vmatpush.bf16.msra.mxu0 %v463
      %570 = vmatpush.bf16.msra.mxu0 %v462
      %571 = vmatpush.bf16.msra.mxu0 %v461
      %572 = vmatpush.bf16.msra.mxu0 %v460
      %573 = vmatmul.bf16.gmra.mxu0 %v229
      %v574 = vpop.f32.mrf.mxu0
      %v575 = vadd.f32 %v526, %v574
      %v576 = vpop.f32.mrf.mxu0
      %v577 = vadd.f32 %v528, %v576
      %578 = vmatmul.bf16.gmra.mxu0 %v233
      %v579 = vpop.f32.mrf.mxu0
      %v580 = vadd.f32 %v531, %v579
      %v581 = vpop.f32.mrf.mxu0
      %v582 = vadd.f32 %v533, %v581
      %583 = vmatmul.bf16.gmra.mxu0 %v237
      %v584 = vpop.f32.mrf.mxu0
      %v585 = vadd.f32 %v536, %v584
      %v586 = vpop.f32.mrf.mxu0
      %v587 = vadd.f32 %v538, %v586
      %588 = vmatmul.bf16.gmra.mxu0 %v241
      %v589 = vpop.f32.mrf.mxu0
      %v590 = vadd.f32 %v541, %v589
      %v591 = vpop.f32.mrf.mxu0
      %v592 = vadd.f32 %v543, %v591
      %593 = vmatmul.bf16.gmra.mxu0 %v245
      %v594 = vpop.f32.mrf.mxu0
      %v595 = vadd.f32 %v546, %v594
      %v596 = vpop.f32.mrf.mxu0
      %v597 = vadd.f32 %v548, %v596
      %598 = vmatmul.bf16.gmra.mxu0 %v249
      %v599 = vpop.f32.mrf.mxu0
      %v600 = vadd.f32 %v551, %v599
      %v601 = vpop.f32.mrf.mxu0
      %v602 = vadd.f32 %v553, %v601
      %603 = vmatmul.bf16.gmra.mxu0 %v253
      %v604 = vpop.f32.mrf.mxu0
      %v605 = vadd.f32 %v556, %v604
      %v606 = vpop.f32.mrf.mxu0
      %v607 = vadd.f32 %v558, %v606
      %608 = vmatmul.bf16.gmra.mxu0 %v257
      %v609 = vpop.f32.mrf.mxu0
      %v610 = vadd.f32 %v561, %v609
      %v611 = vpop.f32.mrf.mxu0
      %v612 = vadd.f32 %v563, %v611
      %613 = vdwg.mxu0
      %614 = vmatpush.bf16.msra.mxu0 %v475
      %615 = vmatpush.bf16.msra.mxu0 %v474
      %616 = vmatpush.bf16.msra.mxu0 %v473
      %617 = vmatpush.bf16.msra.mxu0 %v472
      %618 = vmatpush.bf16.msra.mxu0 %v471
      %619 = vmatpush.bf16.msra.mxu0 %v470
      %620 = vmatpush.bf16.msra.mxu0 %v469
      %621 = vmatpush.bf16.msra.mxu0 %v468
      %622 = vmatmul.bf16.gmra.mxu0 %v230
      %v623 = vpop.f32.mrf.mxu0
      %v624 = vadd.f32 %v575, %v623
      %v625 = vpop.f32.mrf.mxu0
      %v626 = vadd.f32 %v577, %v625
      %627 = vmatmul.bf16.gmra.mxu0 %v234
      %v628 = vpop.f32.mrf.mxu0
      %v629 = vadd.f32 %v580, %v628
      %v630 = vpop.f32.mrf.mxu0
      %v631 = vadd.f32 %v582, %v630
      %632 = vmatmul.bf16.gmra.mxu0 %v238
      %v633 = vpop.f32.mrf.mxu0
      %v634 = vadd.f32 %v585, %v633
      %v635 = vpop.f32.mrf.mxu0
      %v636 = vadd.f32 %v587, %v635
      %637 = vmatmul.bf16.gmra.mxu0 %v242
      %v638 = vpop.f32.mrf.mxu0
      %v639 = vadd.f32 %v590, %v638
      %v640 = vpop.f32.mrf.mxu0
      %v641 = vadd.f32 %v592, %v640
      %642 = vmatmul.bf16.gmra.mxu0 %v246
      %v643 = vpop.f32.mrf.mxu0
      %v644 = vadd.f32 %v595, %v643
      %v645 = vpop.f32.mrf.mxu0
      %v646 = vadd.f32 %v597, %v645
      %647 = vmatmul.bf16.gmra.mxu0 %v250
      %v648 = vpop.f32.mrf.mxu0
      %v649 = vadd.f32 %v600, %v648
      %v650 = vpop.f32.mrf.mxu0
      %v651 = vadd.f32 %v602, %v650
      %652 = vmatmul.bf16.gmra.mxu0 %v254
      %v653 = vpop.f32.mrf.mxu0
      %v654 = vadd.f32 %v605, %v653
      %v655 = vpop.f32.mrf.mxu0
      %v656 = vadd.f32 %v607, %v655
      %657 = vmatmul.bf16.gmra.mxu0 %v258
      %v658 = vpop.f32.mrf.mxu0
      %v659 = vadd.f32 %v610, %v658
      %v660 = vpop.f32.mrf.mxu0
      %v661 = vadd.f32 %v612, %v660
      %662 = vdwg.mxu0
      %663 = vmatpush.bf16.msra.mxu0 %v483
      %664 = vmatpush.bf16.msra.mxu0 %v482
      %665 = vmatpush.bf16.msra.mxu0 %v481
      %666 = vmatpush.bf16.msra.mxu0 %v480
      %667 = vmatpush.bf16.msra.mxu0 %v479
      %668 = vmatpush.bf16.msra.mxu0 %v478
      %669 = vmatpush.bf16.msra.mxu0 %v477
      %670 = vmatpush.bf16.msra.mxu0 %v476
      %671 = vmatmul.bf16.gmra.mxu0 %v231
      %v672 = vpop.f32.mrf.mxu0
      %v673 = vadd.f32 %v624, %v672
      %v674 = vpop.f32.mrf.mxu0
      %v675 = vadd.f32 %v626, %v674
      %676 = vmatmul.bf16.gmra.mxu0 %v235
      %v677 = vpop.f32.mrf.mxu0
      %v678 = vadd.f32 %v629, %v677
      %v679 = vpop.f32.mrf.mxu0
      %v680 = vadd.f32 %v631, %v679
      %681 = vmatmul.bf16.gmra.mxu0 %v239
      %v682 = vpop.f32.mrf.mxu0
      %v683 = vadd.f32 %v634, %v682
      %v684 = vpop.f32.mrf.mxu0
      %v685 = vadd.f32 %v636, %v684
      %686 = vmatmul.bf16.gmra.mxu0 %v243
      %v687 = vpop.f32.mrf.mxu0
      %v688 = vadd.f32 %v639, %v687
      %v689 = vpop.f32.mrf.mxu0
      %v690 = vadd.f32 %v641, %v689
      %691 = vmatmul.bf16.gmra.mxu0 %v247
      %v692 = vpop.f32.mrf.mxu0
      %v693 = vadd.f32 %v644, %v692
      %v694 = vpop.f32.mrf.mxu0
      %v695 = vadd.f32 %v646, %v694
      %696 = vmatmul.bf16.gmra.mxu0 %v251
      %v697 = vpop.f32.mrf.mxu0
      %v698 = vadd.f32 %v649, %v697
      %v699 = vpop.f32.mrf.mxu0
      %v700 = vadd.f32 %v651, %v699
      %701 = vmatmul.bf16.gmra.mxu0 %v255
      %v702 = vpop.f32.mrf.mxu0
      %v703 = vadd.f32 %v654, %v702
      %v704 = vpop.f32.mrf.mxu0
      %v705 = vadd.f32 %v656, %v704
      %706 = vmatmul.bf16.gmra.mxu0 %v259
      %v707 = vpop.f32.mrf.mxu0
      %v708 = vadd.f32 %v659, %v707
      %v709 = vpop.f32.mrf.mxu0
      %v710 = vadd.f32 %v661, %v709
      %711 = vdwg.mxu0
      %v712 = vmax.f32 %v673, 0.0
      %v713 = vmax.f32 %v675, 0.0
      %v714 = vmax.f32 %v678, 0.0
      %v715 = vmax.f32 %v680, 0.0
      %v716 = vmax.f32 %v683, 0.0
      %v717 = vmax.f32 %v685, 0.0
      %v718 = vmax.f32 %v688, 0.0
      %v719 = vmax.f32 %v690, 0.0
      %v720 = vmax.f32 %v693, 0.0
      %v721 = vmax.f32 %v695, 0.0
      %v722 = vmax.f32 %v698, 0.0
      %v723 = vmax.f32 %v700, 0.0
      %v724 = vmax.f32 %v703, 0.0
      %v725 = vmax.f32 %v705, 0.0
      %v726 = vmax.f32 %v708, 0.0
      %v727 = vmax.f32 %v710, 0.0
      %728 = vst [vmem:[%s163] sm:$0xff] %v712
      %729 = vst [vmem:[%s163 + $0x8] sm:$0xff] %v713
      %730 = vst [vmem:[%s163 + $0x10] sm:$0xff] %v714
      %731 = vst [vmem:[%s163 + $0x18] sm:$0xff] %v715
      %732 = vst [vmem:[%s163 + $0x20] sm:$0xff] %v716
      %733 = vst [vmem:[%s163 + $0x28] sm:$0xff] %v717
      %734 = vst [vmem:[%s163 + $0x30] sm:$0xff] %v718
      %735 = vst [vmem:[%s163 + $0x38] sm:$0xff] %v719
      %736 = vst [vmem:[%s163 + $0x40] sm:$0xff] %v720
      %737 = vst [vmem:[%s163 + $0x48] sm:$0xff] %v721
      %738 = vst [vmem:[%s163 + $0x50] sm:$0xff] %v722
      %739 = vst [vmem:[%s163 + $0x58] sm:$0xff] %v723
      %740 = vst [vmem:[%s163 + $0x60] sm:$0xff] %v724
      %741 = vst [vmem:[%s163 + $0x68] sm:$0xff] %v725
      %742 = vst [vmem:[%s163 + $0x70] sm:$0xff] %v726
      %743 = vst [vmem:[%s163 + $0x78] sm:$0xff] %v727
      %p744 = scmp.lt.s32.totalorder %s13, 3
      %s745 = scalar_select %p744, %s13, 3
      %s746 = smul.addr %s745, 16
      %s747 = smul.addr %s746, 8
      %s748 = scalar_lea.vmem %s2, %s747
      // Predicated region
      $region29: #{dcgan_g_forward_pallas.5} parent=27 // pred_check
        %p749 = pneg %p83
      $region30: #{dcgan_g_forward_pallas.5} parent=27 // pred_check_branch
        %751 = sbr.rel (%p749) target = $region32
      $region31: #{dcgan_g_forward_pallas.5} parent=27 // pred_region
        _
      $region32: #{dcgan_g_forward_pallas.5} parent=27 // pred_fallthru
        _
    $region28: #{dcgan_g_forward_pallas.5} parent=5 // pred_fallthru
      _
    %p752 = scmp.le.s32.totalorder 2, %s8
    // Predicated region
    $region33: #{dcgan_g_forward_pallas.5} parent=5 // pred_check
      %p753 = pneg %p752
    $region34: #{dcgan_g_forward_pallas.5} parent=5 // pred_check_branch
      %755 = sbr.rel (%p753) target = $region36
    $region35: #{dcgan_g_forward_pallas.5} parent=5 // pred_region
      %s756 = ssub.s32 %s8, 2
      // Predicated region
      $region37: #{dcgan_g_forward_pallas.5} parent=35 // pred_check
        %p757 = pneg %p89
      $region38: #{dcgan_g_forward_pallas.5} parent=35 // pred_check_branch
        %759 = sbr.rel (%p757) target = $region40
      $region39: #{dcgan_g_forward_pallas.5} parent=35 // pred_region
        %p760 = scmp.lt.s32.totalorder %s14, 3
        %s761 = scalar_select %p760, %s14, 3
        %s762 = smul.addr %s761, 16
        %s763 = smul.addr %s762, 8
        %s764 = scalar_lea.vmem %s2, %s763
      $region40: #{dcgan_g_forward_pallas.5} parent=35 // pred_fallthru
        _
    $region36: #{dcgan_g_forward_pallas.5} parent=5 // pred_fallthru
      _
  $region6: #{dcgan_g_forward_pallas.5} parent=0 // loop_footer
    %s12 = sadd.s32 1, %s8
  $region7: #{dcgan_g_forward_pallas.5} parent=0 // loop_footer_branch
    %7 = sbr.rel target = $region3
  $region8: #{dcgan_g_forward_pallas.5} parent=0 // loop_exit
    _

</llo_original>
